<compile_context>
chip_gen: v7x
topology: tpu7x:2x2x1
jax: 0.10.0
libtpu: 0.0.40
codegen_flags: <defaults>
</compile_context>

<pallas_src>
from functools import partial

import jax
import jax.numpy as jnp
from jax import lax
from jax.experimental import pallas as pl
from jax.experimental.pallas import tpu as pltpu


def _round_up(x, m):
    return (x + m - 1) // m * m


# --------------------------------- kernel ------------------------------------

def _upsample_conv_kernel(x_ref, w_ref, b_ref, out_ref, hp_ref, *,
                          H, W, Cin, Cout4, PAD):
    """3x3 conv (stride 1, pad 1) for one batch element on flattened spatial layout.

    x_ref:   (1, H*W, Cin)          f32 input block
    w_ref:   (3, 3*Cin, Cout4)      bf16 weights, indexed [ky][kx*Cin + ci][co]
    b_ref:   (1, Cout4)             f32 bias
    out_ref: (1, H*W, Cout4)        f32 output block
    hp_ref:  (PAD + H*W + PAD, Cin) f32 scratch with zero halos (PAD rows, PAD % 8 == 0)
    """
    HW = H * W

    # Stage input into the padded scratch. Halos are re-zeroed every grid step
    # (cheap, and safe when the "parallel" batch axis is split across TensorCores).
    zeros_pad = jnp.zeros((PAD, Cin), jnp.float32)
    hp_ref[pl.ds(0, PAD), :] = zeros_pad
    hp_ref[pl.ds(PAD + HW, PAD), :] = zeros_pad
    hp_ref[pl.ds(PAD, HW), :] = x_ref[0]

    # Hoisted horizontal-border masks (computed once, reused by all taps).
    col = lax.broadcasted_iota(jnp.int32, (HW, 1), 0) % W
    not_left = col != 0           # kills dx = -1 taps at x == 0
    not_right = col != W - 1      # kills dx = +1 taps at x == W-1

    acc = jnp.zeros((HW, Cout4), jnp.float32)
    for t, dy in enumerate((-1, 0, 1)):
        start = PAD + dy * W      # static; multiple of 8 when W % 8 == 0 (aligned)
        p_m1 = hp_ref[pl.ds(start - 1, HW), :]   # dx = -1
        p_0 = hp_ref[pl.ds(start, HW), :]        # dx =  0
        p_p1 = hp_ref[pl.ds(start + 1, HW), :]   # dx = +1
        p_m1 = jnp.where(not_left, p_m1, 0.0)
        p_p1 = jnp.where(not_right, p_p1, 0.0)
        # Fuse the three dx taps into one K = 3*Cin matmul; bf16 MXU operands,
        # f32 accumulation.
        patch = jnp.concatenate([p_m1, p_0, p_p1], axis=1).astype(jnp.bfloat16)
        acc = acc + jnp.dot(patch, w_ref[t], preferred_element_type=jnp.float32)

    out_ref[0] = (acc + b_ref[...]).astype(out_ref.dtype)


# -------------------------------- wrapper -------------------------------------

def upsample(x_nchw, params):
    """Conv2d(Cin, 4*Cout, 3, 1, 1) + PixelShuffle(2). NCHW in, NCHW out."""
    N, Cin, H, W = x_nchw.shape
    w_hwio = params["conv_w"]                    # (3, 3, Cin, 4*Cout), HWIO
    Cout4 = w_hwio.shape[-1]
    Cout = Cout4 // 4
    HW = H * W
    PAD = _round_up(W + 1, 8)                    # aligned zero halo (>= W + 1 rows)
    ROWS = HW + 2 * PAD

    # NCHW -> (N, H*W, C): channels on the lane axis (4*Cout -> lane-dense output).
    x = jnp.transpose(x_nchw, (0, 2, 3, 1)).reshape(N, HW, Cin)
    # Weights: HWIO -> (ky, kx*Cin + ci, co); pre-cast to bf16 (halves weight DMA).
    w3 = w_hwio.reshape(3, 3 * Cin, Cout4).astype(jnp.bfloat16)
    b = params["conv_b"].reshape(1, Cout4).astype(jnp.float32)

    # Explicit VMEM budget: double-buffered blocks + scratch, plus headroom.
    est = (2 * HW * Cin * 4                       # input block (f32, x2 buffers)
           + 2 * 3 * 3 * Cin * Cout4 * 2          # bf16 weights (x2 buffers)
           + 2 * Cout4 * 4                        # bias
           + 2 * HW * Cout4 * 4                   # output block (f32, x2 buffers)
           + ROWS * Cin * 4)                      # padded scratch
    vmem_limit = int(min(max(4 * est + (2 << 20), 16 << 20), 64 << 20))

    # TODO(synk): for very large H*W (v7x's 64 MiB VMEM) add a row-tiled grid axis
    # with a 1-row halo; whole-image blocks are fine at the test / decoder scales here.
    y = pl.pallas_call(
        partial(_upsample_conv_kernel, H=H, W=W, Cin=Cin, Cout4=Cout4, PAD=PAD),
        out_shape=jax.ShapeDtypeStruct((N, HW, Cout4), jnp.float32),
        grid_spec=pltpu.PrefetchScalarGridSpec(
            num_scalar_prefetch=0,
            grid=(N,),
            in_specs=[
                pl.BlockSpec((1, HW, Cin), lambda n: (n, 0, 0)),
                pl.BlockSpec((3, 3 * Cin, Cout4), lambda n: (0, 0, 0)),
                pl.BlockSpec((1, Cout4), lambda n: (0, 0)),
            ],
            out_specs=pl.BlockSpec((1, HW, Cout4), lambda n: (n, 0, 0)),
            scratch_shapes=[pltpu.VMEM((ROWS, Cin), jnp.float32)],
        ),
        compiler_params=pltpu.CompilerParams(
            dimension_semantics=("parallel",),    # batch is independent (v7x: 2 TCs)
            vmem_limit_bytes=vmem_limit,
        ),
    )(x, w3, b)

    # PixelShuffle(2): out[n, c, 2h+i, 2w+j] = conv[n, 4c + 2i + j, h, w]
    y = y.reshape(N, H, W, Cout, 2, 2)
    y = jnp.transpose(y, (0, 3, 1, 4, 2, 5)).reshape(N, Cout, 2 * H, 2 * W)
    return y


# ---------------------------- pure-JAX reference -------------------------------

def upsample_ref(x_nchw, params):
    N, Cin, H, W = x_nchw.shape
    w = params["conv_w"]
    Cout4 = w.shape[-1]
    Cout = Cout4 // 4
    x = jnp.transpose(x_nchw, (0, 2, 3, 1))       # NHWC
    y = lax.conv_general_dilated(
        x, w, window_strides=(1, 1), padding=((1, 1), (1, 1)),
        dimension_numbers=("NHWC", "HWIO", "NHWC")) + params["conv_b"]
    y = y.reshape(N, H, W, Cout, 2, 2)
    return jnp.transpose(y, (0, 3, 1, 4, 2, 5)).reshape(N, Cout, 2 * H, 2 * W)


# ---------------------------------- params ------------------------------------

def init_params(key, Cin, Cout):
    # HWIO layout; a PyTorch (4*Cout, Cin, 3, 3) weight maps via transpose(2, 3, 1, 0).
    k0, k1 = jax.random.split(key)
    return {
        "conv_w": jax.random.normal(k0, (3, 3, Cin, 4 * Cout), jnp.float32)
                  / (9 * Cin) ** 0.5,
        "conv_b": 0.1 * jax.random.normal(k1, (4 * Cout,), jnp.float32),
    }


if __name__ == "__main__":
    # conv: 32 -> 128 channels (lane-dense output), PixelShuffle(2) -> 32 ch @ 32x32
    N, Cin, Cout, H, W = 2, 32, 32, 16, 16
    key = jax.random.PRNGKey(0)
    kx, kp = jax.random.split(key)
    x = jax.random.normal(kx, (N, Cin, H, W), jnp.float32)
    params = init_params(kp, Cin, Cout)

    out = jax.block_until_ready(upsample(x, params))
    assert out.shape == (N, Cout, 2 * H, 2 * W), out.shape

    ref = upsample_ref(x, params)
    err = float(jnp.max(jnp.abs(out - ref)))
    # bf16 MXU operands (f32 accumulation) vs f32 reference -> allow bf16-level error.
    if not err < 5e-2:
        raise AssertionError(f"kernel/reference mismatch, max abs err = {err}")
    print("KERNEL_OK")
</pallas_src>

<mosaic_0001>
module attributes {stable_mosaic.version = 11 : i64} {
  func.func @_upsample_conv_kernel(%arg0: i32, %arg1: memref<1x256x32xf32, #tpu.memory_space<vmem>>, %arg2: memref<3x96x128xbf16, #tpu.memory_space<vmem>>, %arg3: memref<1x128xf32, #tpu.memory_space<vmem>>, %arg4: memref<1x256x128xf32, #tpu.memory_space<vmem>>, %arg5: memref<304x32xf32, #tpu.memory_space<vmem>>) attributes {dimension_semantics = [#tpu.dimension_semantics<parallel>], iteration_bounds = array<i64: 2>, scalar_prefetch = 0 : i64, scratch_operands = 1 : i64, tpu.core_type = #tpu.core_type<tc>, window_params = [{transform_indices = @transform_0, window_bounds = array<i64: 1, 256, 32>}, {pipeline_mode = #tpu.pipeline_mode<synchronous>, transform_indices = @transform_1, window_bounds = array<i64: 3, 96, 128>}, {pipeline_mode = #tpu.pipeline_mode<synchronous>, transform_indices = @transform_2, window_bounds = array<i64: 1, 128>}, {transform_indices = @transform_3, window_bounds = array<i64: 1, 256, 128>}]} {
    %cst = arith.constant 0.000000e+00 : f32
    %0 = vector.broadcast %cst : f32 to vector<24x32xf32>
    %c0 = arith.constant 0 : index
    %c0_0 = arith.constant 0 : index
    %1 = vector.load %arg5[%c0, %c0_0] : memref<304x32xf32, #tpu.memory_space<vmem>>, vector<24x32xf32>
    tpu.vector_store %arg5[%c0, %c0_0], %0 {strides = array<i32>} : memref<304x32xf32, #tpu.memory_space<vmem>>, vector<24x32xf32>,
    %c280 = arith.constant 280 : index
    %c0_1 = arith.constant 0 : index
    %2 = vector.load %arg5[%c280, %c0_1] : memref<304x32xf32, #tpu.memory_space<vmem>>, vector<24x32xf32>
    tpu.vector_store %arg5[%c280, %c0_1], %0 {strides = array<i32>} : memref<304x32xf32, #tpu.memory_space<vmem>>, vector<24x32xf32>,
    %c0_2 = arith.constant 0 : index
    %c0_3 = arith.constant 0 : index
    %c0_4 = arith.constant 0 : index
    %3 = vector.load %arg1[%c0_2, %c0_3, %c0_4] : memref<1x256x32xf32, #tpu.memory_space<vmem>>, vector<1x256x32xf32>
    %4 = vector.shape_cast %3 : vector<1x256x32xf32> to vector<256x32xf32>
    %c24 = arith.constant 24 : index
    %c0_5 = arith.constant 0 : index
    %5 = vector.load %arg5[%c24, %c0_5] : memref<304x32xf32, #tpu.memory_space<vmem>>, vector<256x32xf32>
    tpu.vector_store %arg5[%c24, %c0_5], %4 {strides = array<i32>} : memref<304x32xf32, #tpu.memory_space<vmem>>, vector<256x32xf32>,
    %6 = tpu.iota {dimensions = array<i32: 0>} : vector<256x1xi32>
    %c16_i32 = arith.constant 16 : i32
    %c0_i32 = arith.constant 0 : i32
    %7 = arith.cmpi eq, %c16_i32, %c0_i32 : i32
    %c1_i32 = arith.constant 1 : i32
    %8 = arith.select %7, %c1_i32, %c16_i32 : i32
    %9 = vector.broadcast %8 : i32 to vector<256x1xi32>
    %10 = arith.remsi %6, %9 : vector<256x1xi32>
    %c0_i32_6 = arith.constant 0 : i32
    %11 = vector.broadcast %c0_i32_6 : i32 to vector<256x1xi32>
    %12 = arith.cmpi ne, %10, %11 : vector<256x1xi32>
    %c0_i32_7 = arith.constant 0 : i32
    %13 = vector.broadcast %c0_i32_7 : i32 to vector<256x1xi32>
    %14 = arith.cmpi slt, %10, %13 : vector<256x1xi32>
    %c0_i32_8 = arith.constant 0 : i32
    %15 = arith.cmpi slt, %8, %c0_i32_8 : i32
    %16 = vector.broadcast %15 : i1 to vector<256x1xi1>
    %17 = vector.broadcast %16 : vector<256x1xi1> to vector<256x1xi1>
    %18 = arith.xori %14, %17 : vector<256x1xi1>
    %19 = arith.andi %18, %12 : vector<256x1xi1>
    %20 = vector.broadcast %8 : i32 to vector<256x1xi32>
    %21 = arith.addi %10, %20 : vector<256x1xi32>
    %22 = arith.select %19, %21, %10 : vector<256x1xi1>, vector<256x1xi32>
    %c0_i32_9 = arith.constant 0 : i32
    %23 = vector.broadcast %c0_i32_9 : i32 to vector<256x1xi32>
    %24 = arith.cmpi ne, %22, %23 : vector<256x1xi32>
    %c15_i32 = arith.constant 15 : i32
    %25 = vector.broadcast %c15_i32 : i32 to vector<256x1xi32>
    %26 = arith.cmpi ne, %22, %25 : vector<256x1xi32>
    %cst_10 = arith.constant 0.000000e+00 : f32
    %27 = vector.broadcast %cst_10 : f32 to vector<256x128xf32>
    %c7 = arith.constant 7 : index
    %c0_11 = arith.constant 0 : index
    %28 = vector.load %arg5[%c7, %c0_11] : memref<304x32xf32, #tpu.memory_space<vmem>>, vector<256x32xf32>
    %c8 = arith.constant 8 : index
    %c0_12 = arith.constant 0 : index
    %29 = vector.load %arg5[%c8, %c0_12] : memref<304x32xf32, #tpu.memory_space<vmem>>, vector<256x32xf32>
    %c9 = arith.constant 9 : index
    %c0_13 = arith.constant 0 : index
    %30 = vector.load %arg5[%c9, %c0_13] : memref<304x32xf32, #tpu.memory_space<vmem>>, vector<256x32xf32>
    %cst_14 = arith.constant 0.000000e+00 : f32
    %31 = vector.shape_cast %24 : vector<256x1xi1> to vector<256x1xi1>
    %32 = vector.broadcast %31 : vector<256x1xi1> to vector<256x32xi1>
    %33 = vector.broadcast %cst_14 : f32 to vector<256x32xf32>
    %34 = arith.select %32, %28, %33 : vector<256x32xi1>, vector<256x32xf32>
    %cst_15 = arith.constant 0.000000e+00 : f32
    %35 = vector.shape_cast %26 : vector<256x1xi1> to vector<256x1xi1>
    %36 = vector.broadcast %35 : vector<256x1xi1> to vector<256x32xi1>
    %37 = vector.broadcast %cst_15 : f32 to vector<256x32xf32>
    %38 = arith.select %36, %30, %37 : vector<256x32xi1>, vector<256x32xf32>
    %39 = tpu.concatenate %34, %29, %38 in 1 : vector<256x32xf32>, vector<256x32xf32>, vector<256x32xf32> -> vector<256x96xf32>
    %40 = arith.truncf %39 : vector<256x96xf32> to vector<256x96xbf16>
    %c0_16 = arith.constant 0 : index
    %c0_17 = arith.constant 0 : index
    %c0_18 = arith.constant 0 : index
    %41 = vector.load %arg2[%c0_16, %c0_17, %c0_18] : memref<3x96x128xbf16, #tpu.memory_space<vmem>>, vector<1x96x128xbf16>
    %42 = vector.shape_cast %41 : vector<1x96x128xbf16> to vector<96x128xbf16>
    %cst_19 = arith.constant dense<0.000000e+00> : vector<256x128xf32>
    %43 = tpu.matmul %40, %42, %cst_19 {dimension_numbers = #tpu.dot_dimension_numbers<[1], [0], [0], [1], [0, 0, 1, 1], [], []>} : vector<256x96xbf16>, vector<96x128xbf16>, vector<256x128xf32> -> vector<256x128xf32>
    %44 = arith.addf %27, %43 : vector<256x128xf32>
    %c23 = arith.constant 23 : index
    %c0_20 = arith.constant 0 : index
    %45 = vector.load %arg5[%c23, %c0_20] : memref<304x32xf32, #tpu.memory_space<vmem>>, vector<256x32xf32>
    %c24_21 = arith.constant 24 : index
    %c0_22 = arith.constant 0 : index
    %46 = vector.load %arg5[%c24_21, %c0_22] : memref<304x32xf32, #tpu.memory_space<vmem>>, vector<256x32xf32>
    %c25 = arith.constant 25 : index
    %c0_23 = arith.constant 0 : index
    %47 = vector.load %arg5[%c25, %c0_23] : memref<304x32xf32, #tpu.memory_space<vmem>>, vector<256x32xf32>
    %cst_24 = arith.constant 0.000000e+00 : f32
    %48 = vector.shape_cast %24 : vector<256x1xi1> to vector<256x1xi1>
    %49 = vector.broadcast %48 : vector<256x1xi1> to vector<256x32xi1>
    %50 = vector.broadcast %cst_24 : f32 to vector<256x32xf32>
    %51 = arith.select %49, %45, %50 : vector<256x32xi1>, vector<256x32xf32>
    %cst_25 = arith.constant 0.000000e+00 : f32
    %52 = vector.shape_cast %26 : vector<256x1xi1> to vector<256x1xi1>
    %53 = vector.broadcast %52 : vector<256x1xi1> to vector<256x32xi1>
    %54 = vector.broadcast %cst_25 : f32 to vector<256x32xf32>
    %55 = arith.select %53, %47, %54 : vector<256x32xi1>, vector<256x32xf32>
    %56 = tpu.concatenate %51, %46, %55 in 1 : vector<256x32xf32>, vector<256x32xf32>, vector<256x32xf32> -> vector<256x96xf32>
    %57 = arith.truncf %56 : vector<256x96xf32> to vector<256x96xbf16>
    %c1 = arith.constant 1 : index
    %c0_26 = arith.constant 0 : index
    %c0_27 = arith.constant 0 : index
    %58 = vector.load %arg2[%c1, %c0_26, %c0_27] : memref<3x96x128xbf16, #tpu.memory_space<vmem>>, vector<1x96x128xbf16>
    %59 = vector.shape_cast %58 : vector<1x96x128xbf16> to vector<96x128xbf16>
    %cst_28 = arith.constant dense<0.000000e+00> : vector<256x128xf32>
    %60 = tpu.matmul %57, %59, %cst_28 {dimension_numbers = #tpu.dot_dimension_numbers<[1], [0], [0], [1], [0, 0, 1, 1], [], []>} : vector<256x96xbf16>, vector<96x128xbf16>, vector<256x128xf32> -> vector<256x128xf32>
    %61 = arith.addf %44, %60 : vector<256x128xf32>
    %c39 = arith.constant 39 : index
    %c0_29 = arith.constant 0 : index
    %62 = vector.load %arg5[%c39, %c0_29] : memref<304x32xf32, #tpu.memory_space<vmem>>, vector<256x32xf32>
    %c40 = arith.constant 40 : index
    %c0_30 = arith.constant 0 : index
    %63 = vector.load %arg5[%c40, %c0_30] : memref<304x32xf32, #tpu.memory_space<vmem>>, vector<256x32xf32>
    %c41 = arith.constant 41 : index
    %c0_31 = arith.constant 0 : index
    %64 = vector.load %arg5[%c41, %c0_31] : memref<304x32xf32, #tpu.memory_space<vmem>>, vector<256x32xf32>
    %cst_32 = arith.constant 0.000000e+00 : f32
    %65 = vector.shape_cast %24 : vector<256x1xi1> to vector<256x1xi1>
    %66 = vector.broadcast %65 : vector<256x1xi1> to vector<256x32xi1>
    %67 = vector.broadcast %cst_32 : f32 to vector<256x32xf32>
    %68 = arith.select %66, %62, %67 : vector<256x32xi1>, vector<256x32xf32>
    %cst_33 = arith.constant 0.000000e+00 : f32
    %69 = vector.shape_cast %26 : vector<256x1xi1> to vector<256x1xi1>
    %70 = vector.broadcast %69 : vector<256x1xi1> to vector<256x32xi1>
    %71 = vector.broadcast %cst_33 : f32 to vector<256x32xf32>
    %72 = arith.select %70, %64, %71 : vector<256x32xi1>, vector<256x32xf32>
    %73 = tpu.concatenate %68, %63, %72 in 1 : vector<256x32xf32>, vector<256x32xf32>, vector<256x32xf32> -> vector<256x96xf32>
    %74 = arith.truncf %73 : vector<256x96xf32> to vector<256x96xbf16>
    %c2 = arith.constant 2 : index
    %c0_34 = arith.constant 0 : index
    %c0_35 = arith.constant 0 : index
    %75 = vector.load %arg2[%c2, %c0_34, %c0_35] : memref<3x96x128xbf16, #tpu.memory_space<vmem>>, vector<1x96x128xbf16>
    %76 = vector.shape_cast %75 : vector<1x96x128xbf16> to vector<96x128xbf16>
    %cst_36 = arith.constant dense<0.000000e+00> : vector<256x128xf32>
    %77 = tpu.matmul %74, %76, %cst_36 {dimension_numbers = #tpu.dot_dimension_numbers<[1], [0], [0], [1], [0, 0, 1, 1], [], []>} : vector<256x96xbf16>, vector<96x128xbf16>, vector<256x128xf32> -> vector<256x128xf32>
    %78 = arith.addf %61, %77 : vector<256x128xf32>
    %c0_37 = arith.constant 0 : index
    %c0_38 = arith.constant 0 : index
    %79 = vector.load %arg3[%c0_37, %c0_38] : memref<1x128xf32, #tpu.memory_space<vmem>>, vector<1x128xf32>
    %80 = vector.broadcast %79 : vector<1x128xf32> to vector<256x128xf32>
    %81 = arith.addf %78, %80 : vector<256x128xf32>
    %c0_39 = arith.constant 0 : index
    %c0_40 = arith.constant 0 : index
    %c0_41 = arith.constant 0 : index
    %82 = vector.load %arg4[%c0_39, %c0_40, %c0_41] : memref<1x256x128xf32, #tpu.memory_space<vmem>>, vector<1x256x128xf32>
    %83 = vector.shape_cast %82 : vector<1x256x128xf32> to vector<256x128xf32>
    %84 = vector.shape_cast %81 : vector<256x128xf32> to vector<1x256x128xf32>
    tpu.vector_store %arg4[%c0_39, %c0_40, %c0_41], %84 {strides = array<i32>} : memref<1x256x128xf32, #tpu.memory_space<vmem>>, vector<1x256x128xf32>,
    return
  }
  func.func @transform_0(%arg0: i32) -> (i32, i32, i32) {
    %c0_i32 = arith.constant 0 : i32
    %c0_i32_0 = arith.constant 0 : i32
    %c0_i32_1 = arith.constant 0 : i32
    return %arg0, %c0_i32, %c0_i32_0 : i32, i32, i32
  }
  func.func @transform_1(%arg0: i32) -> (i32, i32, i32) {
    %c0_i32 = arith.constant 0 : i32
    %c0_i32_0 = arith.constant 0 : i32
    %c0_i32_1 = arith.constant 0 : i32
    %c0_i32_2 = arith.constant 0 : i32
    return %c0_i32, %c0_i32_0, %c0_i32_1 : i32, i32, i32
  }
  func.func @transform_2(%arg0: i32) -> (i32, i32) {
    %c0_i32 = arith.constant 0 : i32
    %c0_i32_0 = arith.constant 0 : i32
    %c0_i32_1 = arith.constant 0 : i32
    return %c0_i32, %c0_i32_0 : i32, i32
  }
  func.func @transform_3(%arg0: i32) -> (i32, i32, i32) {
    %c0_i32 = arith.constant 0 : i32
    %c0_i32_0 = arith.constant 0 : i32
    %c0_i32_1 = arith.constant 0 : i32
    return %arg0, %c0_i32, %c0_i32_0 : i32, i32, i32
  }
}

</mosaic_0001>

<llo_original>
// kernel: tpu_custom_call.1
$region0: #{tpu_custom_call.1}
  #allocation0 [shape = 'u32[]', space=smem, size = 0x4, offset = 0x4, fixed_abs, tag = 'smem constant byte address 0x4 - core index']
  #allocation1 [shape = 'u32[144,128]{1,0:T(1,128)}', space=vmem, size = 0x12000, scoped, tag = 'internal scratch']
  #allocation2 [shape = 'f32[304,32]{1,0:T(8,128)}', space=vmem, size = 0x26000, scoped, tag = 'scratch operand']
  %s0 = inlined_call_operand.vmem [shape: f32[2,256,32], index: 0, kind: input, shape index: {}]
  %s1 = inlined_call_operand.vmem [shape: bf16[3,96,128], index: 1, kind: input, shape index: {}]
  %s2 = inlined_call_operand.vmem [shape: f32[1,128], index: 2, kind: input, shape index: {}]
  %s3 = inlined_call_operand.hbm [shape: f32[2,256,128], index: 3, kind: output, shape index: {}]
  %s4 = sld [smem:[#allocation0]]
  $region45: #{tpu_custom_call.1} parent=0
    _
  %s6 = ssub.s32 1, %s4
  %s7 = scalar_select 0, %s6, %s4
  $region1: #{tpu_custom_call.1} parent=0
    #allocation3 [shape = 'u8[262144]{0}', space=vmem, size = 0x40000, scoped, tag = 'output window, operand 0']
    #allocation4 [shape = 's32[2]{0}', space=sflag, size = 0x8, scoped, tag = 'scoped memory for tpu_custom_call.1']
    %8 = vsyncpa [#allocation4], 0
    %s9 = scalar_lea.sflag [#allocation4], 1
    %10 = vsyncpa %s9, 0
    loop: start=0, step=1, limit=4
    $region2: #{tpu_custom_call.1} parent=1 // loop_pre_header
      _
    $region3: #{tpu_custom_call.1} parent=1 // loop_header
      %s12 = sphi 0, %s16
      %p13 = scmp.ge.s32.totalorder %s12, 4
      %s22 = sphi 0, %s24
      %s25 = sphi 0, %s22
      %s26 = sphi 0, %s25
      %s42 = sphi 0, %s26
      %s46 = sphi 0, %s46
      %s48 = sphi 0, %s46
      %s49 = sphi 0, %s48
      %s63 = sphi 0, %s49
      %s67 = sphi 0, %s67
      %s69 = sphi 0, %s67
      %s70 = sphi 0, %s69
      %s84 = sphi 0, %s70
      %s90 = sphi 0, %s92
      %s93 = sphi 0, %s90
      %s94 = sphi 0, %s93
      %s110 = sphi 0, %s94
    $region4: #{tpu_custom_call.1} parent=1 // loop_header_branch
      %15 = sbr.rel (%p13) target = $region8
    $region5: #{tpu_custom_call.1} parent=1 // loop_body
      %s17 = ssub.s32 %s12, 1
      %s18 = ssub.s32 %s12, 2
      %s19 = sadd.s32 %s12, 1
      %s20 = ssub.s32 %s12, %s19
      %p21 = scmp.eq.s32.totalorder %s20, 0
      %s23 = sadd.s32 %s22, 1
      %s24 = scalar_select %p21, %s22, %s23
      %p27 = pneg %p21
      %p28 = scmp.eq.s32.totalorder %s12, 1
      %p29 = por %p27, %p28
      %p30 = scmp.ne.s32.totalorder %s22, %s25
      %p31 = scmp.eq.s32.totalorder %s12, 0
      %p32 = por %p30, %p31
      %p33 = scmp.ne.s32.totalorder %s22, %s25
      %p34 = scmp.eq.s32.totalorder %s17, 1
      %p35 = por %p33, %p34
      %p36 = scmp.ne.s32.totalorder %s25, %s26
      %p37 = scmp.eq.s32.totalorder %s17, 0
      %p38 = por %p36, %p37
      %p39 = scmp.ne.s32.totalorder %s25, %s26
      %p40 = scmp.eq.s32.totalorder %s18, 1
      %p41 = por %p39, %p40
      %p43 = scmp.ne.s32.totalorder %s26, %s42
      %p44 = scmp.eq.s32.totalorder %s18, 0
      %p45 = por %p43, %p44
      %s47 = sadd.s32 %s46, 1
      %p50 = scmp.eq.s32.totalorder %s12, 1
      %p51 = scmp.ne.s32.totalorder %s46, %s48
      %p52 = scmp.eq.s32.totalorder %s12, 0
      %p53 = por %p51, %p52
      %p54 = scmp.ne.s32.totalorder %s46, %s48
      %p55 = scmp.eq.s32.totalorder %s17, 1
      %p56 = por %p54, %p55
      %p57 = scmp.ne.s32.totalorder %s48, %s49
      %p58 = scmp.eq.s32.totalorder %s17, 0
      %p59 = por %p57, %p58
      %p60 = scmp.ne.s32.totalorder %s48, %s49
      %p61 = scmp.eq.s32.totalorder %s18, 1
      %p62 = por %p60, %p61
      %p64 = scmp.ne.s32.totalorder %s49, %s63
      %p65 = scmp.eq.s32.totalorder %s18, 0
      %p66 = por %p64, %p65
      %s68 = sadd.s32 %s67, 1
      %p71 = scmp.eq.s32.totalorder %s12, 1
      %p72 = scmp.ne.s32.totalorder %s67, %s69
      %p73 = scmp.eq.s32.totalorder %s12, 0
      %p74 = por %p72, %p73
      %p75 = scmp.ne.s32.totalorder %s67, %s69
      %p76 = scmp.eq.s32.totalorder %s17, 1
      %p77 = por %p75, %p76
      %p78 = scmp.ne.s32.totalorder %s69, %s70
      %p79 = scmp.eq.s32.totalorder %s17, 0
      %p80 = por %p78, %p79
      %p81 = scmp.ne.s32.totalorder %s69, %s70
      %p82 = scmp.eq.s32.totalorder %s18, 1
      %p83 = por %p81, %p82
      %p85 = scmp.ne.s32.totalorder %s70, %s84
      %p86 = scmp.eq.s32.totalorder %s18, 0
      %p87 = por %p85, %p86
      %s88 = ssub.s32 %s12, %s19
      %p89 = scmp.eq.s32.totalorder %s88, 0
      %s91 = sadd.s32 %s90, 1
      %s92 = scalar_select %p89, %s90, %s91
      %p95 = pneg %p89
      %p96 = scmp.eq.s32.totalorder %s12, 1
      %p97 = por %p95, %p96
      %p98 = scmp.ne.s32.totalorder %s90, %s93
      %p99 = scmp.eq.s32.totalorder %s12, 0
      %p100 = por %p98, %p99
      %p101 = scmp.ne.s32.totalorder %s90, %s93
      %p102 = scmp.eq.s32.totalorder %s17, 1
      %p103 = por %p101, %p102
      %p104 = scmp.ne.s32.totalorder %s93, %s94
      %p105 = scmp.eq.s32.totalorder %s17, 0
      %p106 = por %p104, %p105
      %p107 = scmp.ne.s32.totalorder %s93, %s94
      %p108 = scmp.eq.s32.totalorder %s18, 1
      %p109 = por %p107, %p108
      %p111 = scmp.ne.s32.totalorder %s94, %s110
      %p112 = scmp.eq.s32.totalorder %s18, 0
      %p113 = por %p111, %p112
      %p114 = scmp.le.s32.totalorder 1, %s12
      %p115 = scmp.lt.s32.totalorder %s12, 3
      %p116 = pnand %p114, %p115
      %p117 = pneg %p116
      // Predicated region
      $region9: #{tpu_custom_call.1} parent=5 // pred_check
        _
      $region10: #{tpu_custom_call.1} parent=5 // pred_check_branch
        %119 = sbr.rel (%p116) target = $region12
      $region11: #{tpu_custom_call.1} parent=5 // pred_region
        %s120 = ssub.s32 %s12, 1
        // Predicated region
        $region13: #{tpu_custom_call.1} parent=11 // pred_check
          %p121 = pneg %p59
        $region14: #{tpu_custom_call.1} parent=11 // pred_check_branch
          %123 = sbr.rel (%p121) target = $region16
        $region15: #{tpu_custom_call.1} parent=11 // pred_region
          _
        $region16: #{tpu_custom_call.1} parent=11 // pred_fallthru
          _
        // Predicated region
        $region17: #{tpu_custom_call.1} parent=11 // pred_check
          %p124 = pneg %p80
        $region18: #{tpu_custom_call.1} parent=11 // pred_check_branch
          %126 = sbr.rel (%p124) target = $region20
        $region19: #{tpu_custom_call.1} parent=11 // pred_region
          _
        $region20: #{tpu_custom_call.1} parent=11 // pred_fallthru
          _
      $region12: #{tpu_custom_call.1} parent=5 // pred_fallthru
        _
      %p127 = scmp.lt.s32.totalorder %s12, 2
      // Predicated region
      $region21: #{tpu_custom_call.1} parent=5 // pred_check
        %p128 = pneg %p127
      $region22: #{tpu_custom_call.1} parent=5 // pred_check_branch
        %130 = sbr.rel (%p128) target = $region24
      $region23: #{tpu_custom_call.1} parent=5 // pred_region
        // Predicated region
        $region25: #{tpu_custom_call.1} parent=23 // pred_check
          %p131 = pneg %p32
        $region26: #{tpu_custom_call.1} parent=23 // pred_check_branch
          %133 = sbr.rel (%p131) target = $region28
        $region27: #{tpu_custom_call.1} parent=23 // pred_region
          %p134 = scmp.lt.s32.totalorder %s12, 1
          %s135 = scalar_select %p134, %s12, 1
          %s136 = smul.addr %s135, 32
          %s137 = smul.addr %s136, 8
          %s138 = scalar_lea.vmem %s0, %s137
        $region28: #{tpu_custom_call.1} parent=23 // pred_fallthru
          _
      $region24: #{tpu_custom_call.1} parent=5 // pred_fallthru
        _
      %p139 = scmp.le.s32.totalorder 1, %s12
      %p140 = scmp.lt.s32.totalorder %s12, 3
      %p141 = pnand %p139, %p140
      %p142 = pneg %p141
      // Predicated region
      $region29: #{tpu_custom_call.1} parent=5 // pred_check
        _
      $region30: #{tpu_custom_call.1} parent=5 // pred_check_branch
        %144 = sbr.rel (%p141) target = $region32
      $region31: #{tpu_custom_call.1} parent=5 // pred_region
        %s145 = ssub.s32 %s12, 1
        %p146 = scmp.lt.s32.totalorder %s17, 1
        %s147 = scalar_select %p146, %s17, 1
        %s148 = smul.addr %s147, 32
        %s149 = smul.addr %s148, 8
        %s150 = scalar_lea.vmem %s0, %s149
        %p151 = pneg %p38
        %p152 = pneg %p35
        %p153 = pneg %p59
        %p154 = pneg %p56
        %p155 = pneg %p80
        %p156 = pneg %p77
        %p157 = pneg %p106
        %p158 = pneg %p103
        %s159 = sand.u32 %s93, 1
        %s160 = scalar_lea.sflag [#allocation4], %s159
        %s161 = sand.u32 %s93, 1
        %s162 = smul.addr %s161, 256
        %s163 = scalar_lea.vmem [#allocation3], %s162
        %p164 = scmp.lt.s32.totalorder %s17, 1
        %s165 = scalar_select %p164, %s17, 1
        %s166 = smul.addr %s165, 32
        %s167 = smul.addr %s166, 8
        %s168 = scalar_lea.vmem %s0, %s167
        %vm170 = vcmask 261120
        %171 = vst.msk [vmem:[#allocation2] sm:$0xff] %vm170, 0.0
        %172 = vst.msk [vmem:[#allocation2 + $0x8] sm:$0xff] %vm170, 0.0
        %173 = vst.msk [vmem:[#allocation2 + $0x10] sm:$0xff] %vm170, 0.0
        %174 = vst.msk [vmem:[#allocation2 + $0x118] sm:$0xff] %vm170, 0.0
        %175 = vst.msk [vmem:[#allocation2 + $0x120] sm:$0xff] %vm170, 0.0
        %176 = vst.msk [vmem:[#allocation2 + $0x128] sm:$0xff] %vm170, 0.0
        %v177 = vld [vmem:[%s168] sm:$0xff]
        %v178 = vld [vmem:[%s168 + $0x8] sm:$0xff]
        %v179 = vld [vmem:[%s168 + $0x10] sm:$0xff]
        %v180 = vld [vmem:[%s168 + $0x18] sm:$0xff]
        %v181 = vld [vmem:[%s168 + $0x20] sm:$0xff]
        %v182 = vld [vmem:[%s168 + $0x28] sm:$0xff]
        %v183 = vld [vmem:[%s168 + $0x30] sm:$0xff]
        %v184 = vld [vmem:[%s168 + $0x38] sm:$0xff]
        %v185 = vld [vmem:[%s168 + $0x40] sm:$0xff]
        %v186 = vld [vmem:[%s168 + $0x48] sm:$0xff]
        %v187 = vld [vmem:[%s168 + $0x50] sm:$0xff]
        %v188 = vld [vmem:[%s168 + $0x58] sm:$0xff]
        %v189 = vld [vmem:[%s168 + $0x60] sm:$0xff]
        %v190 = vld [vmem:[%s168 + $0x68] sm:$0xff]
        %v191 = vld [vmem:[%s168 + $0x70] sm:$0xff]
        %v192 = vld [vmem:[%s168 + $0x78] sm:$0xff]
        %v193 = vld [vmem:[%s168 + $0x80] sm:$0xff]
        %v194 = vld [vmem:[%s168 + $0x88] sm:$0xff]
        %v195 = vld [vmem:[%s168 + $0x90] sm:$0xff]
        %v196 = vld [vmem:[%s168 + $0x98] sm:$0xff]
        %v197 = vld [vmem:[%s168 + $0xa0] sm:$0xff]
        %v198 = vld [vmem:[%s168 + $0xa8] sm:$0xff]
        %v199 = vld [vmem:[%s168 + $0xb0] sm:$0xff]
        %v200 = vld [vmem:[%s168 + $0xb8] sm:$0xff]
        %v201 = vld [vmem:[%s168 + $0xc0] sm:$0xff]
        %v202 = vld [vmem:[%s168 + $0xc8] sm:$0xff]
        %v203 = vld [vmem:[%s168 + $0xd0] sm:$0xff]
        %v204 = vld [vmem:[%s168 + $0xd8] sm:$0xff]
        %v205 = vld [vmem:[%s168 + $0xe0] sm:$0xff]
        %v206 = vld [vmem:[%s168 + $0xe8] sm:$0xff]
        %v207 = vld [vmem:[%s168 + $0xf0] sm:$0xff]
        %v208 = vld [vmem:[%s168 + $0xf8] sm:$0xff]
        %209 = vst.msk [vmem:[#allocation2 + $0x18] sm:$0xff] %vm170, %v177
        %210 = vst.msk [vmem:[#allocation2 + $0x20] sm:$0xff] %vm170, %v178
        %211 = vst.msk [vmem:[#allocation2 + $0x28] sm:$0xff] %vm170, %v179
        %212 = vst.msk [vmem:[#allocation2 + $0x30] sm:$0xff] %vm170, %v180
        %213 = vst.msk [vmem:[#allocation2 + $0x38] sm:$0xff] %vm170, %v181
        %214 = vst.msk [vmem:[#allocation2 + $0x40] sm:$0xff] %vm170, %v182
        %215 = vst.msk [vmem:[#allocation2 + $0x48] sm:$0xff] %vm170, %v183
        %216 = vst.msk [vmem:[#allocation2 + $0x50] sm:$0xff] %vm170, %v184
        %217 = vst.msk [vmem:[#allocation2 + $0x58] sm:$0xff] %vm170, %v185
        %218 = vst.msk [vmem:[#allocation2 + $0x60] sm:$0xff] %vm170, %v186
        %219 = vst.msk [vmem:[#allocation2 + $0x68] sm:$0xff] %vm170, %v187
        %220 = vst.msk [vmem:[#allocation2 + $0x70] sm:$0xff] %vm170, %v188
        %221 = vst.msk [vmem:[#allocation2 + $0x78] sm:$0xff] %vm170, %v189
        %222 = vst.msk [vmem:[#allocation2 + $0x80] sm:$0xff] %vm170, %v190
        %223 = vst.msk [vmem:[#allocation2 + $0x88] sm:$0xff] %vm170, %v191
        %224 = vst.msk [vmem:[#allocation2 + $0x90] sm:$0xff] %vm170, %v192
        %225 = vst.msk [vmem:[#allocation2 + $0x98] sm:$0xff] %vm170, %v193
        %226 = vst.msk [vmem:[#allocation2 + $0xa0] sm:$0xff] %vm170, %v194
        %227 = vst.msk [vmem:[#allocation2 + $0xa8] sm:$0xff] %vm170, %v195
        %228 = vst.msk [vmem:[#allocation2 + $0xb0] sm:$0xff] %vm170, %v196
        %229 = vst.msk [vmem:[#allocation2 + $0xb8] sm:$0xff] %vm170, %v197
        %230 = vst.msk [vmem:[#allocation2 + $0xc0] sm:$0xff] %vm170, %v198
        %231 = vst.msk [vmem:[#allocation2 + $0xc8] sm:$0xff] %vm170, %v199
        %232 = vst.msk [vmem:[#allocation2 + $0xd0] sm:$0xff] %vm170, %v200
        %233 = vst.msk [vmem:[#allocation2 + $0xd8] sm:$0xff] %vm170, %v201
        %234 = vst.msk [vmem:[#allocation2 + $0xe0] sm:$0xff] %vm170, %v202
        %235 = vst.msk [vmem:[#allocation2 + $0xe8] sm:$0xff] %vm170, %v203
        %236 = vst.msk [vmem:[#allocation2 + $0xf0] sm:$0xff] %vm170, %v204
        %237 = vst.msk [vmem:[#allocation2 + $0xf8] sm:$0xff] %vm170, %v205
        %238 = vst.msk [vmem:[#allocation2 + $0x100] sm:$0xff] %vm170, %v206
        %239 = vst.msk [vmem:[#allocation2 + $0x108] sm:$0xff] %vm170, %v207
        %240 = vst.msk [vmem:[#allocation2 + $0x110] sm:$0xff] %vm170, %v208
        %v241 = vlaneseq
        %v242 = vshrl.u32 %v241, 7
        %v243 = vadd.s32 %v242, 8
        %v244 = vadd.s32 %v242, 16
        %v245 = vadd.s32 %v242, 24
        %v246 = vadd.s32 %v242, 32
        %v247 = vadd.s32 %v242, 40
        %v248 = vadd.s32 %v242, 48
        %v249 = vadd.s32 %v242, 56
        %v250 = vadd.s32 %v242, 64
        %v251 = vadd.s32 %v242, 72
        %v252 = vadd.s32 %v242, 80
        %v253 = vadd.s32 %v242, 88
        %v254 = vadd.s32 %v242, 96
        %v255 = vadd.s32 %v242, 104
        %v256 = vadd.s32 %v242, 112
        %v257 = vadd.s32 %v242, 120
        %v258 = vadd.s32 %v242, 128
        %v259 = vadd.s32 %v242, 136
        %v260 = vadd.s32 %v242, 144
        %v261 = vadd.s32 %v242, 152
        %v262 = vadd.s32 %v242, 160
        %v263 = vadd.s32 %v242, 168
        %v264 = vadd.s32 %v242, 176
        %v265 = vadd.s32 %v242, 184
        %v266 = vadd.s32 %v242, 192
        %v267 = vadd.s32 %v242, 200
        %v268 = vadd.s32 %v242, 208
        %v269 = vadd.s32 %v242, 216
        %v270 = vadd.s32 %v242, 224
        %v271 = vadd.s32 %v242, 232
        %v272 = vadd.s32 %v242, 240
        %v273 = vadd.s32 %v242, 248
        %vm274 = vcmp.lt.s32.totalorder %v242, 0
        %v275 = vsub.s32 0, %v242
        %v276 = vsel %vm274, %v275, %v242
        %v277 = vshrl.u32 %v276, 4
        %v278 = vand.u32 %v276, 15
        %v279 = vsub.s32 0, %v278
        %v280 = vsel %vm274, %v279, %v278
        %vm281 = vcmp.lt.s32.totalorder %v243, 0
        %v282 = vsub.s32 0, %v243
        %v283 = vsel %vm281, %v282, %v243
        %v284 = vshrl.u32 %v283, 4
        %v285 = vand.u32 %v283, 15
        %v286 = vsub.s32 0, %v285
        %v287 = vsel %vm281, %v286, %v285
        %vm288 = vcmp.lt.s32.totalorder %v244, 0
        %v289 = vsub.s32 0, %v244
        %v290 = vsel %vm288, %v289, %v244
        %v291 = vshrl.u32 %v290, 4
        %v292 = vand.u32 %v290, 15
        %v293 = vsub.s32 0, %v292
        %v294 = vsel %vm288, %v293, %v292
        %vm295 = vcmp.lt.s32.totalorder %v245, 0
        %v296 = vsub.s32 0, %v245
        %v297 = vsel %vm295, %v296, %v245
        %v298 = vshrl.u32 %v297, 4
        %v299 = vand.u32 %v297, 15
        %v300 = vsub.s32 0, %v299
        %v301 = vsel %vm295, %v300, %v299
        %vm302 = vcmp.lt.s32.totalorder %v246, 0
        %v303 = vsub.s32 0, %v246
        %v304 = vsel %vm302, %v303, %v246
        %v305 = vshrl.u32 %v304, 4
        %v306 = vand.u32 %v304, 15
        %v307 = vsub.s32 0, %v306
        %v308 = vsel %vm302, %v307, %v306
        %vm309 = vcmp.lt.s32.totalorder %v247, 0
        %v310 = vsub.s32 0, %v247
        %v311 = vsel %vm309, %v310, %v247
        %v312 = vshrl.u32 %v311, 4
        %v313 = vand.u32 %v311, 15
        %v314 = vsub.s32 0, %v313
        %v315 = vsel %vm309, %v314, %v313
        %vm316 = vcmp.lt.s32.totalorder %v248, 0
        %v317 = vsub.s32 0, %v248
        %v318 = vsel %vm316, %v317, %v248
        %v319 = vshrl.u32 %v318, 4
        %v320 = vand.u32 %v318, 15
        %v321 = vsub.s32 0, %v320
        %v322 = vsel %vm316, %v321, %v320
        %vm323 = vcmp.lt.s32.totalorder %v249, 0
        %v324 = vsub.s32 0, %v249
        %v325 = vsel %vm323, %v324, %v249
        %v326 = vshrl.u32 %v325, 4
        %v327 = vand.u32 %v325, 15
        %v328 = vsub.s32 0, %v327
        %v329 = vsel %vm323, %v328, %v327
        %vm330 = vcmp.lt.s32.totalorder %v250, 0
        %v331 = vsub.s32 0, %v250
        %v332 = vsel %vm330, %v331, %v250
        %v333 = vshrl.u32 %v332, 4
        %v334 = vand.u32 %v332, 15
        %v335 = vsub.s32 0, %v334
        %v336 = vsel %vm330, %v335, %v334
        %vm337 = vcmp.lt.s32.totalorder %v251, 0
        %v338 = vsub.s32 0, %v251
        %v339 = vsel %vm337, %v338, %v251
        %v340 = vshrl.u32 %v339, 4
        %v341 = vand.u32 %v339, 15
        %v342 = vsub.s32 0, %v341
        %v343 = vsel %vm337, %v342, %v341
        %vm344 = vcmp.lt.s32.totalorder %v252, 0
        %v345 = vsub.s32 0, %v252
        %v346 = vsel %vm344, %v345, %v252
        %v347 = vshrl.u32 %v346, 4
        %v348 = vand.u32 %v346, 15
        %v349 = vsub.s32 0, %v348
        %v350 = vsel %vm344, %v349, %v348
        %vm351 = vcmp.lt.s32.totalorder %v253, 0
        %v352 = vsub.s32 0, %v253
        %v353 = vsel %vm351, %v352, %v253
        %v354 = vshrl.u32 %v353, 4
        %v355 = vand.u32 %v353, 15
        %v356 = vsub.s32 0, %v355
        %v357 = vsel %vm351, %v356, %v355
        %vm358 = vcmp.lt.s32.totalorder %v254, 0
        %v359 = vsub.s32 0, %v254
        %v360 = vsel %vm358, %v359, %v254
        %v361 = vshrl.u32 %v360, 4
        %v362 = vand.u32 %v360, 15
        %v363 = vsub.s32 0, %v362
        %v364 = vsel %vm358, %v363, %v362
        %vm365 = vcmp.lt.s32.totalorder %v255, 0
        %v366 = vsub.s32 0, %v255
        %v367 = vsel %vm365, %v366, %v255
        %v368 = vshrl.u32 %v367, 4
        %v369 = vand.u32 %v367, 15
        %v370 = vsub.s32 0, %v369
        %v371 = vsel %vm365, %v370, %v369
        %vm372 = vcmp.lt.s32.totalorder %v256, 0
        %v373 = vsub.s32 0, %v256
        %v374 = vsel %vm372, %v373, %v256
        %v375 = vshrl.u32 %v374, 4
        %v376 = vand.u32 %v374, 15
        %v377 = vsub.s32 0, %v376
        %v378 = vsel %vm372, %v377, %v376
        %vm379 = vcmp.lt.s32.totalorder %v257, 0
        %v380 = vsub.s32 0, %v257
        %v381 = vsel %vm379, %v380, %v257
        %v382 = vshrl.u32 %v381, 4
        %v383 = vand.u32 %v381, 15
        %v384 = vsub.s32 0, %v383
        %v385 = vsel %vm379, %v384, %v383
        %vm386 = vcmp.lt.s32.totalorder %v258, 0
        %v387 = vsub.s32 0, %v258
        %v388 = vsel %vm386, %v387, %v258
        %v389 = vshrl.u32 %v388, 4
        %v390 = vand.u32 %v388, 15
        %v391 = vsub.s32 0, %v390
        %v392 = vsel %vm386, %v391, %v390
        %vm393 = vcmp.lt.s32.totalorder %v259, 0
        %v394 = vsub.s32 0, %v259
        %v395 = vsel %vm393, %v394, %v259
        %v396 = vshrl.u32 %v395, 4
        %v397 = vand.u32 %v395, 15
        %v398 = vsub.s32 0, %v397
        %v399 = vsel %vm393, %v398, %v397
        %vm400 = vcmp.lt.s32.totalorder %v260, 0
        %v401 = vsub.s32 0, %v260
        %v402 = vsel %vm400, %v401, %v260
        %v403 = vshrl.u32 %v402, 4
        %v404 = vand.u32 %v402, 15
        %v405 = vsub.s32 0, %v404
        %v406 = vsel %vm400, %v405, %v404
        %vm407 = vcmp.lt.s32.totalorder %v261, 0
        %v408 = vsub.s32 0, %v261
        %v409 = vsel %vm407, %v408, %v261
        %v410 = vshrl.u32 %v409, 4
        %v411 = vand.u32 %v409, 15
        %v412 = vsub.s32 0, %v411
        %v413 = vsel %vm407, %v412, %v411
        %vm414 = vcmp.lt.s32.totalorder %v262, 0
        %v415 = vsub.s32 0, %v262
        %v416 = vsel %vm414, %v415, %v262
        %v417 = vshrl.u32 %v416, 4
        %v418 = vand.u32 %v416, 15
        %v419 = vsub.s32 0, %v418
        %v420 = vsel %vm414, %v419, %v418
        %vm421 = vcmp.lt.s32.totalorder %v263, 0
        %v422 = vsub.s32 0, %v263
        %v423 = vsel %vm421, %v422, %v263
        %v424 = vshrl.u32 %v423, 4
        %v425 = vand.u32 %v423, 15
        %v426 = vsub.s32 0, %v425
        %v427 = vsel %vm421, %v426, %v425
        %vm428 = vcmp.lt.s32.totalorder %v264, 0
        %v429 = vsub.s32 0, %v264
        %v430 = vsel %vm428, %v429, %v264
        %v431 = vshrl.u32 %v430, 4
        %v432 = vand.u32 %v430, 15
        %v433 = vsub.s32 0, %v432
        %v434 = vsel %vm428, %v433, %v432
        %vm435 = vcmp.lt.s32.totalorder %v265, 0
        %v436 = vsub.s32 0, %v265
        %v437 = vsel %vm435, %v436, %v265
        %v438 = vshrl.u32 %v437, 4
        %v439 = vand.u32 %v437, 15
        %v440 = vsub.s32 0, %v439
        %v441 = vsel %vm435, %v440, %v439
        %vm442 = vcmp.lt.s32.totalorder %v266, 0
        %v443 = vsub.s32 0, %v266
        %v444 = vsel %vm442, %v443, %v266
        %v445 = vshrl.u32 %v444, 4
        %v446 = vand.u32 %v444, 15
        %v447 = vsub.s32 0, %v446
        %v448 = vsel %vm442, %v447, %v446
        %vm449 = vcmp.lt.s32.totalorder %v267, 0
        %v450 = vsub.s32 0, %v267
        %v451 = vsel %vm449, %v450, %v267
        %v452 = vshrl.u32 %v451, 4
        %v453 = vand.u32 %v451, 15
        %v454 = vsub.s32 0, %v453
        %v455 = vsel %vm449, %v454, %v453
        %vm456 = vcmp.lt.s32.totalorder %v268, 0
        %v457 = vsub.s32 0, %v268
        %v458 = vsel %vm456, %v457, %v268
        %v459 = vshrl.u32 %v458, 4
        %v460 = vand.u32 %v458, 15
        %v461 = vsub.s32 0, %v460
        %v462 = vsel %vm456, %v461, %v460
        %vm463 = vcmp.lt.s32.totalorder %v269, 0
        %v464 = vsub.s32 0, %v269
        %v465 = vsel %vm463, %v464, %v269
        %v466 = vshrl.u32 %v465, 4
        %v467 = vand.u32 %v465, 15
        %v468 = vsub.s32 0, %v467
        %v469 = vsel %vm463, %v468, %v467
        %vm470 = vcmp.lt.s32.totalorder %v270, 0
        %v471 = vsub.s32 0, %v270
        %v472 = vsel %vm470, %v471, %v270
        %v473 = vshrl.u32 %v472, 4
        %v474 = vand.u32 %v472, 15
        %v475 = vsub.s32 0, %v474
        %v476 = vsel %vm470, %v475, %v474
        %vm477 = vcmp.lt.s32.totalorder %v271, 0
        %v478 = vsub.s32 0, %v271
        %v479 = vsel %vm477, %v478, %v271
        %v480 = vshrl.u32 %v479, 4
        %v481 = vand.u32 %v479, 15
        %v482 = vsub.s32 0, %v481
        %v483 = vsel %vm477, %v482, %v481
        %vm484 = vcmp.lt.s32.totalorder %v272, 0
        %v485 = vsub.s32 0, %v272
        %v486 = vsel %vm484, %v485, %v272
        %v487 = vshrl.u32 %v486, 4
        %v488 = vand.u32 %v486, 15
        %v489 = vsub.s32 0, %v488
        %v490 = vsel %vm484, %v489, %v488
        %vm491 = vcmp.lt.s32.totalorder %v273, 0
        %v492 = vsub.s32 0, %v273
        %v493 = vsel %vm491, %v492, %v273
        %v494 = vshrl.u32 %v493, 4
        %v495 = vand.u32 %v493, 15
        %v496 = vsub.s32 0, %v495
        %v497 = vsel %vm491, %v496, %v495
        %vm498 = vcmp.ne.s32.totalorder %v280, 0
        %vm499 = vcmp.ne.s32.totalorder %v287, 0
        %vm500 = vcmp.ne.s32.totalorder %v294, 0
        %vm501 = vcmp.ne.s32.totalorder %v301, 0
        %vm502 = vcmp.ne.s32.totalorder %v308, 0
        %vm503 = vcmp.ne.s32.totalorder %v315, 0
        %vm504 = vcmp.ne.s32.totalorder %v322, 0
        %vm505 = vcmp.ne.s32.totalorder %v329, 0
        %vm506 = vcmp.ne.s32.totalorder %v336, 0
        %vm507 = vcmp.ne.s32.totalorder %v343, 0
        %vm508 = vcmp.ne.s32.totalorder %v350, 0
        %vm509 = vcmp.ne.s32.totalorder %v357, 0
        %vm510 = vcmp.ne.s32.totalorder %v364, 0
        %vm511 = vcmp.ne.s32.totalorder %v371, 0
        %vm512 = vcmp.ne.s32.totalorder %v378, 0
        %vm513 = vcmp.ne.s32.totalorder %v385, 0
        %vm514 = vcmp.ne.s32.totalorder %v392, 0
        %vm515 = vcmp.ne.s32.totalorder %v399, 0
        %vm516 = vcmp.ne.s32.totalorder %v406, 0
        %vm517 = vcmp.ne.s32.totalorder %v413, 0
        %vm518 = vcmp.ne.s32.totalorder %v420, 0
        %vm519 = vcmp.ne.s32.totalorder %v427, 0
        %vm520 = vcmp.ne.s32.totalorder %v434, 0
        %vm521 = vcmp.ne.s32.totalorder %v441, 0
        %vm522 = vcmp.ne.s32.totalorder %v448, 0
        %vm523 = vcmp.ne.s32.totalorder %v455, 0
        %vm524 = vcmp.ne.s32.totalorder %v462, 0
        %vm525 = vcmp.ne.s32.totalorder %v469, 0
        %vm526 = vcmp.ne.s32.totalorder %v476, 0
        %vm527 = vcmp.ne.s32.totalorder %v483, 0
        %vm528 = vcmp.ne.s32.totalorder %v490, 0
        %vm529 = vcmp.ne.s32.totalorder %v497, 0
        %vm530 = vcmp.lt.s32.totalorder %v280, 0
        %vm531 = vcmp.lt.s32.totalorder %v287, 0
        %vm532 = vcmp.lt.s32.totalorder %v294, 0
        %vm533 = vcmp.lt.s32.totalorder %v301, 0
        %vm534 = vcmp.lt.s32.totalorder %v308, 0
        %vm535 = vcmp.lt.s32.totalorder %v315, 0
        %vm536 = vcmp.lt.s32.totalorder %v322, 0
        %vm537 = vcmp.lt.s32.totalorder %v329, 0
        %vm538 = vcmp.lt.s32.totalorder %v336, 0
        %vm539 = vcmp.lt.s32.totalorder %v343, 0
        %vm540 = vcmp.lt.s32.totalorder %v350, 0
        %vm541 = vcmp.lt.s32.totalorder %v357, 0
        %vm542 = vcmp.lt.s32.totalorder %v364, 0
        %vm543 = vcmp.lt.s32.totalorder %v371, 0
        %vm544 = vcmp.lt.s32.totalorder %v378, 0
        %vm545 = vcmp.lt.s32.totalorder %v385, 0
        %vm546 = vcmp.lt.s32.totalorder %v392, 0
        %vm547 = vcmp.lt.s32.totalorder %v399, 0
        %vm548 = vcmp.lt.s32.totalorder %v406, 0
        %vm549 = vcmp.lt.s32.totalorder %v413, 0
        %vm550 = vcmp.lt.s32.totalorder %v420, 0
        %vm551 = vcmp.lt.s32.totalorder %v427, 0
        %vm552 = vcmp.lt.s32.totalorder %v434, 0
        %vm553 = vcmp.lt.s32.totalorder %v441, 0
        %vm554 = vcmp.lt.s32.totalorder %v448, 0
        %vm555 = vcmp.lt.s32.totalorder %v455, 0
        %vm556 = vcmp.lt.s32.totalorder %v462, 0
        %vm557 = vcmp.lt.s32.totalorder %v469, 0
        %vm558 = vcmp.lt.s32.totalorder %v476, 0
        %vm559 = vcmp.lt.s32.totalorder %v483, 0
        %vm560 = vcmp.lt.s32.totalorder %v490, 0
        %vm561 = vcmp.lt.s32.totalorder %v497, 0
        %vm562 = vmand %vm530, %vm498
        %vm563 = vmand %vm531, %vm499
        %vm564 = vmand %vm532, %vm500
        %vm565 = vmand %vm533, %vm501
        %vm566 = vmand %vm534, %vm502
        %vm567 = vmand %vm535, %vm503
        %vm568 = vmand %vm536, %vm504
        %vm569 = vmand %vm537, %vm505
        %vm570 = vmand %vm538, %vm506
        %vm571 = vmand %vm539, %vm507
        %vm572 = vmand %vm540, %vm508
        %vm573 = vmand %vm541, %vm509
        %vm574 = vmand %vm542, %vm510
        %vm575 = vmand %vm543, %vm511
        %vm576 = vmand %vm544, %vm512
        %vm577 = vmand %vm545, %vm513
        %vm578 = vmand %vm546, %vm514
        %vm579 = vmand %vm547, %vm515
        %vm580 = vmand %vm548, %vm516
        %vm581 = vmand %vm549, %vm517
        %vm582 = vmand %vm550, %vm518
        %vm583 = vmand %vm551, %vm519
        %vm584 = vmand %vm552, %vm520
        %vm585 = vmand %vm553, %vm521
        %vm586 = vmand %vm554, %vm522
        %vm587 = vmand %vm555, %vm523
        %vm588 = vmand %vm556, %vm524
        %vm589 = vmand %vm557, %vm525
        %vm590 = vmand %vm558, %vm526
        %vm591 = vmand %vm559, %vm527
        %vm592 = vmand %vm560, %vm528
        %vm593 = vmand %vm561, %vm529
        %v594 = vadd.s32 %v280, 16
        %v595 = vadd.s32 %v287, 16
        %v596 = vadd.s32 %v294, 16
        %v597 = vadd.s32 %v301, 16
        %v598 = vadd.s32 %v308, 16
        %v599 = vadd.s32 %v315, 16
        %v600 = vadd.s32 %v322, 16
        %v601 = vadd.s32 %v329, 16
        %v602 = vadd.s32 %v336, 16
        %v603 = vadd.s32 %v343, 16
        %v604 = vadd.s32 %v350, 16
        %v605 = vadd.s32 %v357, 16
        %v606 = vadd.s32 %v364, 16
        %v607 = vadd.s32 %v371, 16
        %v608 = vadd.s32 %v378, 16
        %v609 = vadd.s32 %v385, 16
        %v610 = vadd.s32 %v392, 16
        %v611 = vadd.s32 %v399, 16
        %v612 = vadd.s32 %v406, 16
        %v613 = vadd.s32 %v413, 16
        %v614 = vadd.s32 %v420, 16
        %v615 = vadd.s32 %v427, 16
        %v616 = vadd.s32 %v434, 16
        %v617 = vadd.s32 %v441, 16
        %v618 = vadd.s32 %v448, 16
        %v619 = vadd.s32 %v455, 16
        %v620 = vadd.s32 %v462, 16
        %v621 = vadd.s32 %v469, 16
        %v622 = vadd.s32 %v476, 16
        %v623 = vadd.s32 %v483, 16
        %v624 = vadd.s32 %v490, 16
        %v625 = vadd.s32 %v497, 16
        %v626 = vsel %vm562, %v594, %v280
        %v627 = vsel %vm563, %v595, %v287
        %v628 = vsel %vm564, %v596, %v294
        %v629 = vsel %vm565, %v597, %v301
        %v630 = vsel %vm566, %v598, %v308
        %v631 = vsel %vm567, %v599, %v315
        %v632 = vsel %vm568, %v600, %v322
        %v633 = vsel %vm569, %v601, %v329
        %v634 = vsel %vm570, %v602, %v336
        %v635 = vsel %vm571, %v603, %v343
        %v636 = vsel %vm572, %v604, %v350
        %v637 = vsel %vm573, %v605, %v357
        %v638 = vsel %vm574, %v606, %v364
        %v639 = vsel %vm575, %v607, %v371
        %v640 = vsel %vm576, %v608, %v378
        %v641 = vsel %vm577, %v609, %v385
        %v642 = vsel %vm578, %v610, %v392
        %v643 = vsel %vm579, %v611, %v399
        %v644 = vsel %vm580, %v612, %v406
        %v645 = vsel %vm581, %v613, %v413
        %v646 = vsel %vm582, %v614, %v420
        %v647 = vsel %vm583, %v615, %v427
        %v648 = vsel %vm584, %v616, %v434
        %v649 = vsel %vm585, %v617, %v441
        %v650 = vsel %vm586, %v618, %v448
        %v651 = vsel %vm587, %v619, %v455
        %v652 = vsel %vm588, %v620, %v462
        %v653 = vsel %vm589, %v621, %v469
        %v654 = vsel %vm590, %v622, %v476
        %v655 = vsel %vm591, %v623, %v483
        %v656 = vsel %vm592, %v624, %v490
        %v657 = vsel %vm593, %v625, %v497
        %vm658 = vcmp.ne.s32.totalorder %v626, 0
        %vm659 = vcmp.ne.s32.totalorder %v627, 0
        %vm660 = vcmp.ne.s32.totalorder %v628, 0
        %vm661 = vcmp.ne.s32.totalorder %v629, 0
        %vm662 = vcmp.ne.s32.totalorder %v630, 0
        %vm663 = vcmp.ne.s32.totalorder %v631, 0
        %vm664 = vcmp.ne.s32.totalorder %v632, 0
        %vm665 = vcmp.ne.s32.totalorder %v633, 0
        %vm666 = vcmp.ne.s32.totalorder %v634, 0
        %vm667 = vcmp.ne.s32.totalorder %v635, 0
        %vm668 = vcmp.ne.s32.totalorder %v636, 0
        %vm669 = vcmp.ne.s32.totalorder %v637, 0
        %vm670 = vcmp.ne.s32.totalorder %v638, 0
        %vm671 = vcmp.ne.s32.totalorder %v639, 0
        %vm672 = vcmp.ne.s32.totalorder %v640, 0
        %vm673 = vcmp.ne.s32.totalorder %v641, 0
        %vm674 = vcmp.ne.s32.totalorder %v642, 0
        %vm675 = vcmp.ne.s32.totalorder %v643, 0
        %vm676 = vcmp.ne.s32.totalorder %v644, 0
        %vm677 = vcmp.ne.s32.totalorder %v645, 0
        %vm678 = vcmp.ne.s32.totalorder %v646, 0
        %vm679 = vcmp.ne.s32.totalorder %v647, 0
        %vm680 = vcmp.ne.s32.totalorder %v648, 0
        %vm681 = vcmp.ne.s32.totalorder %v649, 0
        %vm682 = vcmp.ne.s32.totalorder %v650, 0
        %vm683 = vcmp.ne.s32.totalorder %v651, 0
        %vm684 = vcmp.ne.s32.totalorder %v652, 0
        %vm685 = vcmp.ne.s32.totalorder %v653, 0
        %vm686 = vcmp.ne.s32.totalorder %v654, 0
        %vm687 = vcmp.ne.s32.totalorder %v655, 0
        %vm688 = vcmp.ne.s32.totalorder %v656, 0
        %vm689 = vcmp.ne.s32.totalorder %v657, 0
        %vm690 = vcmp.ne.s32.totalorder %v626, 15
        %vm691 = vcmp.ne.s32.totalorder %v627, 15
        %vm692 = vcmp.ne.s32.totalorder %v628, 15
        %vm693 = vcmp.ne.s32.totalorder %v629, 15
        %vm694 = vcmp.ne.s32.totalorder %v630, 15
        %vm695 = vcmp.ne.s32.totalorder %v631, 15
        %vm696 = vcmp.ne.s32.totalorder %v632, 15
        %vm697 = vcmp.ne.s32.totalorder %v633, 15
        %vm698 = vcmp.ne.s32.totalorder %v634, 15
        %vm699 = vcmp.ne.s32.totalorder %v635, 15
        %vm700 = vcmp.ne.s32.totalorder %v636, 15
        %vm701 = vcmp.ne.s32.totalorder %v637, 15
        %vm702 = vcmp.ne.s32.totalorder %v638, 15
        %vm703 = vcmp.ne.s32.totalorder %v639, 15
        %vm704 = vcmp.ne.s32.totalorder %v640, 15
        %vm705 = vcmp.ne.s32.totalorder %v641, 15
        %vm706 = vcmp.ne.s32.totalorder %v642, 15
        %vm707 = vcmp.ne.s32.totalorder %v643, 15
        %vm708 = vcmp.ne.s32.totalorder %v644, 15
        %vm709 = vcmp.ne.s32.totalorder %v645, 15
        %vm710 = vcmp.ne.s32.totalorder %v646, 15
        %vm711 = vcmp.ne.s32.totalorder %v647, 15
        %vm712 = vcmp.ne.s32.totalorder %v648, 15
        %vm713 = vcmp.ne.s32.totalorder %v649, 15
        %vm714 = vcmp.ne.s32.totalorder %v650, 15
        %vm715 = vcmp.ne.s32.totalorder %v651, 15
        %vm716 = vcmp.ne.s32.totalorder %v652, 15
        %vm717 = vcmp.ne.s32.totalorder %v653, 15
        %vm718 = vcmp.ne.s32.totalorder %v654, 15
        %vm719 = vcmp.ne.s32.totalorder %v655, 15
        %vm720 = vcmp.ne.s32.totalorder %v656, 15
        %vm721 = vcmp.ne.s32.totalorder %v657, 15
        %v722 = vld [vmem:[#allocation2 + $0x7] sm:$0xff]
        %v723 = vld [vmem:[#allocation2 + $0xf] sm:$0xff]
        %v724 = vld [vmem:[#allocation2 + $0x17] sm:$0xff]
        %v725 = vld [vmem:[#allocation2 + $0x1f] sm:$0xff]
        %v726 = vld [vmem:[#allocation2 + $0x27] sm:$0xff]
        %v727 = vld [vmem:[#allocation2 + $0x2f] sm:$0xff]
        %v728 = vld [vmem:[#allocation2 + $0x37] sm:$0xff]
        %v729 = vld [vmem:[#allocation2 + $0x3f] sm:$0xff]
        %v730 = vld [vmem:[#allocation2 + $0x47] sm:$0xff]
        %v731 = vld [vmem:[#allocation2 + $0x4f] sm:$0xff]
        %v732 = vld [vmem:[#allocation2 + $0x57] sm:$0xff]
        %v733 = vld [vmem:[#allocation2 + $0x5f] sm:$0xff]
        %v734 = vld [vmem:[#allocation2 + $0x67] sm:$0xff]
        %v735 = vld [vmem:[#allocation2 + $0x6f] sm:$0xff]
        %v736 = vld [vmem:[#allocation2 + $0x77] sm:$0xff]
        %v737 = vld [vmem:[#allocation2 + $0x7f] sm:$0xff]
        %v738 = vld [vmem:[#allocation2 + $0x87] sm:$0xff]
        %v739 = vld [vmem:[#allocation2 + $0x8f] sm:$0xff]
        %v740 = vld [vmem:[#allocation2 + $0x97] sm:$0xff]
        %v741 = vld [vmem:[#allocation2 + $0x9f] sm:$0xff]
        %v742 = vld [vmem:[#allocation2 + $0xa7] sm:$0xff]
        %v743 = vld [vmem:[#allocation2 + $0xaf] sm:$0xff]
        %v744 = vld [vmem:[#allocation2 + $0xb7] sm:$0xff]
        %v745 = vld [vmem:[#allocation2 + $0xbf] sm:$0xff]
        %v746 = vld [vmem:[#allocation2 + $0xc7] sm:$0xff]
        %v747 = vld [vmem:[#allocation2 + $0xcf] sm:$0xff]
        %v748 = vld [vmem:[#allocation2 + $0xd7] sm:$0xff]
        %v749 = vld [vmem:[#allocation2 + $0xdf] sm:$0xff]
        %v750 = vld [vmem:[#allocation2 + $0xe7] sm:$0xff]
        %v751 = vld [vmem:[#allocation2 + $0xef] sm:$0xff]
        %v752 = vld [vmem:[#allocation2 + $0xf7] sm:$0xff]
        %v753 = vld [vmem:[#allocation2 + $0xff] sm:$0xff]
        %v754 = vld [vmem:[#allocation2 + $0x8] sm:$0xff]
        %v755 = vld [vmem:[#allocation2 + $0x10] sm:$0xff]
        %v756 = vld [vmem:[#allocation2 + $0x18] sm:$0xff]
        %v757 = vld [vmem:[#allocation2 + $0x20] sm:$0xff]
        %v758 = vld [vmem:[#allocation2 + $0x28] sm:$0xff]
        %v759 = vld [vmem:[#allocation2 + $0x30] sm:$0xff]
        %v760 = vld [vmem:[#allocation2 + $0x38] sm:$0xff]
        %v761 = vld [vmem:[#allocation2 + $0x40] sm:$0xff]
        %v762 = vld [vmem:[#allocation2 + $0x48] sm:$0xff]
        %v763 = vld [vmem:[#allocation2 + $0x50] sm:$0xff]
        %v764 = vld [vmem:[#allocation2 + $0x58] sm:$0xff]
        %v765 = vld [vmem:[#allocation2 + $0x60] sm:$0xff]
        %v766 = vld [vmem:[#allocation2 + $0x68] sm:$0xff]
        %v767 = vld [vmem:[#allocation2 + $0x70] sm:$0xff]
        %v768 = vld [vmem:[#allocation2 + $0x78] sm:$0xff]
        %v769 = vld [vmem:[#allocation2 + $0x80] sm:$0xff]
        %v770 = vld [vmem:[#allocation2 + $0x88] sm:$0xff]
        %v771 = vld [vmem:[#allocation2 + $0x90] sm:$0xff]
        %v772 = vld [vmem:[#allocation2 + $0x98] sm:$0xff]
        %v773 = vld [vmem:[#allocation2 + $0xa0] sm:$0xff]
        %v774 = vld [vmem:[#allocation2 + $0xa8] sm:$0xff]
        %v775 = vld [vmem:[#allocation2 + $0xb0] sm:$0xff]
        %v776 = vld [vmem:[#allocation2 + $0xb8] sm:$0xff]
        %v777 = vld [vmem:[#allocation2 + $0xc0] sm:$0xff]
        %v778 = vld [vmem:[#allocation2 + $0xc8] sm:$0xff]
        %v779 = vld [vmem:[#allocation2 + $0xd0] sm:$0xff]
        %v780 = vld [vmem:[#allocation2 + $0xd8] sm:$0xff]
        %v781 = vld [vmem:[#allocation2 + $0xe0] sm:$0xff]
        %v782 = vld [vmem:[#allocation2 + $0xe8] sm:$0xff]
        %v783 = vld [vmem:[#allocation2 + $0xf0] sm:$0xff]
        %v784 = vld [vmem:[#allocation2 + $0xf8] sm:$0xff]
        %v785 = vld [vmem:[#allocation2 + $0x100] sm:$0xff]
        %v786 = vld [vmem:[#allocation2 + $0x9] sm:$0xff]
        %v787 = vld [vmem:[#allocation2 + $0x11] sm:$0xff]
        %v788 = vld [vmem:[#allocation2 + $0x19] sm:$0xff]
        %v789 = vld [vmem:[#allocation2 + $0x21] sm:$0xff]
        %v790 = vld [vmem:[#allocation2 + $0x29] sm:$0xff]
        %v791 = vld [vmem:[#allocation2 + $0x31] sm:$0xff]
        %v792 = vld [vmem:[#allocation2 + $0x39] sm:$0xff]
        %v793 = vld [vmem:[#allocation2 + $0x41] sm:$0xff]
        %v794 = vld [vmem:[#allocation2 + $0x49] sm:$0xff]
        %v795 = vld [vmem:[#allocation2 + $0x51] sm:$0xff]
        %v796 = vld [vmem:[#allocation2 + $0x59] sm:$0xff]
        %v797 = vld [vmem:[#allocation2 + $0x61] sm:$0xff]
        %v798 = vld [vmem:[#allocation2 + $0x69] sm:$0xff]
        %v799 = vld [vmem:[#allocation2 + $0x71] sm:$0xff]
        %v800 = vld [vmem:[#allocation2 + $0x79] sm:$0xff]
        %v801 = vld [vmem:[#allocation2 + $0x81] sm:$0xff]
        %v802 = vld [vmem:[#allocation2 + $0x89] sm:$0xff]
        %v803 = vld [vmem:[#allocation2 + $0x91] sm:$0xff]
        %v804 = vld [vmem:[#allocation2 + $0x99] sm:$0xff]
        %v805 = vld [vmem:[#allocation2 + $0xa1] sm:$0xff]
        %v806 = vld [vmem:[#allocation2 + $0xa9] sm:$0xff]
        %v807 = vld [vmem:[#allocation2 + $0xb1] sm:$0xff]
        %v808 = vld [vmem:[#allocation2 + $0xb9] sm:$0xff]
        %v809 = vld [vmem:[#allocation2 + $0xc1] sm:$0xff]
        %v810 = vld [vmem:[#allocation2 + $0xc9] sm:$0xff]
        %v811 = vld [vmem:[#allocation2 + $0xd1] sm:$0xff]
        %v812 = vld [vmem:[#allocation2 + $0xd9] sm:$0xff]
        %v813 = vld [vmem:[#allocation2 + $0xe1] sm:$0xff]
        %v814 = vld [vmem:[#allocation2 + $0xe9] sm:$0xff]
        %v815 = vld [vmem:[#allocation2 + $0xf1] sm:$0xff]
        %v816 = vld [vmem:[#allocation2 + $0xf9] sm:$0xff]
        %v817 = vld [vmem:[#allocation2 + $0x101] sm:$0xff]
        %v818 = vsel %vm658, 1, 0
        %v819 = vsel %vm659, 1, 0
        %v820 = vsel %vm660, 1, 0
        %v821 = vsel %vm661, 1, 0
        %v822 = vsel %vm662, 1, 0
        %v823 = vsel %vm663, 1, 0
        %v824 = vsel %vm664, 1, 0
        %v825 = vsel %vm665, 1, 0
        %v826 = vsel %vm666, 1, 0
        %v827 = vsel %vm667, 1, 0
        %v828 = vsel %vm668, 1, 0
        %v829 = vsel %vm669, 1, 0
        %v830 = vsel %vm670, 1, 0
        %v831 = vsel %vm671, 1, 0
        %v832 = vsel %vm672, 1, 0
        %v833 = vsel %vm673, 1, 0
        %v834 = vsel %vm674, 1, 0
        %v835 = vsel %vm675, 1, 0
        %v836 = vsel %vm676, 1, 0
        %v837 = vsel %vm677, 1, 0
        %v838 = vsel %vm678, 1, 0
        %v839 = vsel %vm679, 1, 0
        %v840 = vsel %vm680, 1, 0
        %v841 = vsel %vm681, 1, 0
        %v842 = vsel %vm682, 1, 0
        %v843 = vsel %vm683, 1, 0
        %v844 = vsel %vm684, 1, 0
        %v845 = vsel %vm685, 1, 0
        %v846 = vsel %vm686, 1, 0
        %v847 = vsel %vm687, 1, 0
        %v848 = vsel %vm688, 1, 0
        %v849 = vsel %vm689, 1, 0
        %vm850 = vcmp.eq.s32.totalorder %v818, 1
        %vm851 = vcmp.eq.s32.totalorder %v819, 1
        %vm852 = vcmp.eq.s32.totalorder %v820, 1
        %vm853 = vcmp.eq.s32.totalorder %v821, 1
        %vm854 = vcmp.eq.s32.totalorder %v822, 1
        %vm855 = vcmp.eq.s32.totalorder %v823, 1
        %vm856 = vcmp.eq.s32.totalorder %v824, 1
        %vm857 = vcmp.eq.s32.totalorder %v825, 1
        %vm858 = vcmp.eq.s32.totalorder %v826, 1
        %vm859 = vcmp.eq.s32.totalorder %v827, 1
        %vm860 = vcmp.eq.s32.totalorder %v828, 1
        %vm861 = vcmp.eq.s32.totalorder %v829, 1
        %vm862 = vcmp.eq.s32.totalorder %v830, 1
        %vm863 = vcmp.eq.s32.totalorder %v831, 1
        %vm864 = vcmp.eq.s32.totalorder %v832, 1
        %vm865 = vcmp.eq.s32.totalorder %v833, 1
        %vm866 = vcmp.eq.s32.totalorder %v834, 1
        %vm867 = vcmp.eq.s32.totalorder %v835, 1
        %vm868 = vcmp.eq.s32.totalorder %v836, 1
        %vm869 = vcmp.eq.s32.totalorder %v837, 1
        %vm870 = vcmp.eq.s32.totalorder %v838, 1
        %vm871 = vcmp.eq.s32.totalorder %v839, 1
        %vm872 = vcmp.eq.s32.totalorder %v840, 1
        %vm873 = vcmp.eq.s32.totalorder %v841, 1
        %vm874 = vcmp.eq.s32.totalorder %v842, 1
        %vm875 = vcmp.eq.s32.totalorder %v843, 1
        %vm876 = vcmp.eq.s32.totalorder %v844, 1
        %vm877 = vcmp.eq.s32.totalorder %v845, 1
        %vm878 = vcmp.eq.s32.totalorder %v846, 1
        %vm879 = vcmp.eq.s32.totalorder %v847, 1
        %vm880 = vcmp.eq.s32.totalorder %v848, 1
        %vm881 = vcmp.eq.s32.totalorder %v849, 1
        %v882 = vsel %vm850, %v722, 0.0
        %v883 = vsel %vm851, %v723, 0.0
        %v884 = vsel %vm852, %v724, 0.0
        %v885 = vsel %vm853, %v725, 0.0
        %v886 = vsel %vm854, %v726, 0.0
        %v887 = vsel %vm855, %v727, 0.0
        %v888 = vsel %vm856, %v728, 0.0
        %v889 = vsel %vm857, %v729, 0.0
        %v890 = vsel %vm858, %v730, 0.0
        %v891 = vsel %vm859, %v731, 0.0
        %v892 = vsel %vm860, %v732, 0.0
        %v893 = vsel %vm861, %v733, 0.0
        %v894 = vsel %vm862, %v734, 0.0
        %v895 = vsel %vm863, %v735, 0.0
        %v896 = vsel %vm864, %v736, 0.0
        %v897 = vsel %vm865, %v737, 0.0
        %v898 = vsel %vm866, %v738, 0.0
        %v899 = vsel %vm867, %v739, 0.0
        %v900 = vsel %vm868, %v740, 0.0
        %v901 = vsel %vm869, %v741, 0.0
        %v902 = vsel %vm870, %v742, 0.0
        %v903 = vsel %vm871, %v743, 0.0
        %v904 = vsel %vm872, %v744, 0.0
        %v905 = vsel %vm873, %v745, 0.0
        %v906 = vsel %vm874, %v746, 0.0
        %v907 = vsel %vm875, %v747, 0.0
        %v908 = vsel %vm876, %v748, 0.0
        %v909 = vsel %vm877, %v749, 0.0
        %v910 = vsel %vm878, %v750, 0.0
        %v911 = vsel %vm879, %v751, 0.0
        %v912 = vsel %vm880, %v752, 0.0
        %v913 = vsel %vm881, %v753, 0.0
        %v914 = vsel %vm690, 1, 0
        %v915 = vsel %vm691, 1, 0
        %v916 = vsel %vm692, 1, 0
        %v917 = vsel %vm693, 1, 0
        %v918 = vsel %vm694, 1, 0
        %v919 = vsel %vm695, 1, 0
        %v920 = vsel %vm696, 1, 0
        %v921 = vsel %vm697, 1, 0
        %v922 = vsel %vm698, 1, 0
        %v923 = vsel %vm699, 1, 0
        %v924 = vsel %vm700, 1, 0
        %v925 = vsel %vm701, 1, 0
        %v926 = vsel %vm702, 1, 0
        %v927 = vsel %vm703, 1, 0
        %v928 = vsel %vm704, 1, 0
        %v929 = vsel %vm705, 1, 0
        %v930 = vsel %vm706, 1, 0
        %v931 = vsel %vm707, 1, 0
        %v932 = vsel %vm708, 1, 0
        %v933 = vsel %vm709, 1, 0
        %v934 = vsel %vm710, 1, 0
        %v935 = vsel %vm711, 1, 0
        %v936 = vsel %vm712, 1, 0
        %v937 = vsel %vm713, 1, 0
        %v938 = vsel %vm714, 1, 0
        %v939 = vsel %vm715, 1, 0
        %v940 = vsel %vm716, 1, 0
        %v941 = vsel %vm717, 1, 0
        %v942 = vsel %vm718, 1, 0
        %v943 = vsel %vm719, 1, 0
        %v944 = vsel %vm720, 1, 0
        %v945 = vsel %vm721, 1, 0
        %vm946 = vcmp.eq.s32.totalorder %v914, 1
        %vm947 = vcmp.eq.s32.totalorder %v915, 1
        %vm948 = vcmp.eq.s32.totalorder %v916, 1
        %vm949 = vcmp.eq.s32.totalorder %v917, 1
        %vm950 = vcmp.eq.s32.totalorder %v918, 1
        %vm951 = vcmp.eq.s32.totalorder %v919, 1
        %vm952 = vcmp.eq.s32.totalorder %v920, 1
        %vm953 = vcmp.eq.s32.totalorder %v921, 1
        %vm954 = vcmp.eq.s32.totalorder %v922, 1
        %vm955 = vcmp.eq.s32.totalorder %v923, 1
        %vm956 = vcmp.eq.s32.totalorder %v924, 1
        %vm957 = vcmp.eq.s32.totalorder %v925, 1
        %vm958 = vcmp.eq.s32.totalorder %v926, 1
        %vm959 = vcmp.eq.s32.totalorder %v927, 1
        %vm960 = vcmp.eq.s32.totalorder %v928, 1
        %vm961 = vcmp.eq.s32.totalorder %v929, 1
        %vm962 = vcmp.eq.s32.totalorder %v930, 1
        %vm963 = vcmp.eq.s32.totalorder %v931, 1
        %vm964 = vcmp.eq.s32.totalorder %v932, 1
        %vm965 = vcmp.eq.s32.totalorder %v933, 1
        %vm966 = vcmp.eq.s32.totalorder %v934, 1
        %vm967 = vcmp.eq.s32.totalorder %v935, 1
        %vm968 = vcmp.eq.s32.totalorder %v936, 1
        %vm969 = vcmp.eq.s32.totalorder %v937, 1
        %vm970 = vcmp.eq.s32.totalorder %v938, 1
        %vm971 = vcmp.eq.s32.totalorder %v939, 1
        %vm972 = vcmp.eq.s32.totalorder %v940, 1
        %vm973 = vcmp.eq.s32.totalorder %v941, 1
        %vm974 = vcmp.eq.s32.totalorder %v942, 1
        %vm975 = vcmp.eq.s32.totalorder %v943, 1
        %vm976 = vcmp.eq.s32.totalorder %v944, 1
        %vm977 = vcmp.eq.s32.totalorder %v945, 1
        %v978 = vsel %vm946, %v786, 0.0
        %v979 = vsel %vm947, %v787, 0.0
        %v980 = vsel %vm948, %v788, 0.0
        %v981 = vsel %vm949, %v789, 0.0
        %v982 = vsel %vm950, %v790, 0.0
        %v983 = vsel %vm951, %v791, 0.0
        %v984 = vsel %vm952, %v792, 0.0
        %v985 = vsel %vm953, %v793, 0.0
        %v986 = vsel %vm954, %v794, 0.0
        %v987 = vsel %vm955, %v795, 0.0
        %v988 = vsel %vm956, %v796, 0.0
        %v989 = vsel %vm957, %v797, 0.0
        %v990 = vsel %vm958, %v798, 0.0
        %v991 = vsel %vm959, %v799, 0.0
        %v992 = vsel %vm960, %v800, 0.0
        %v993 = vsel %vm961, %v801, 0.0
        %v994 = vsel %vm962, %v802, 0.0
        %v995 = vsel %vm963, %v803, 0.0
        %v996 = vsel %vm964, %v804, 0.0
        %v997 = vsel %vm965, %v805, 0.0
        %v998 = vsel %vm966, %v806, 0.0
        %v999 = vsel %vm967, %v807, 0.0
        %v1000 = vsel %vm968, %v808, 0.0
        %v1001 = vsel %vm969, %v809, 0.0
        %v1002 = vsel %vm970, %v810, 0.0
        %v1003 = vsel %vm971, %v811, 0.0
        %v1004 = vsel %vm972, %v812, 0.0
        %v1005 = vsel %vm973, %v813, 0.0
        %v1006 = vsel %vm974, %v814, 0.0
        %v1007 = vsel %vm975, %v815, 0.0
        %v1008 = vsel %vm976, %v816, 0.0
        %v1009 = vsel %vm977, %v817, 0.0
        %1042 = vrot.lane.b32.xlu0 %v754, 32
        %v1043 = vpop.permute.xlu0 %1042
        %1044 = vrot.lane.b32.xlu0 %v755, 32
        %v1045 = vpop.permute.xlu0 %1044
        %1046 = vrot.lane.b32.xlu0 %v756, 32
        %v1047 = vpop.permute.xlu0 %1046
        %1048 = vrot.lane.b32.xlu0 %v757, 32
        %v1049 = vpop.permute.xlu0 %1048
        %1050 = vrot.lane.b32.xlu0 %v758, 32
        %v1051 = vpop.permute.xlu0 %1050
        %1052 = vrot.lane.b32.xlu0 %v759, 32
        %v1053 = vpop.permute.xlu0 %1052
        %1054 = vrot.lane.b32.xlu0 %v760, 32
        %v1055 = vpop.permute.xlu0 %1054
        %1056 = vrot.lane.b32.xlu0 %v761, 32
        %v1057 = vpop.permute.xlu0 %1056
        %1058 = vrot.lane.b32.xlu0 %v762, 32
        %v1059 = vpop.permute.xlu0 %1058
        %1060 = vrot.lane.b32.xlu0 %v763, 32
        %v1061 = vpop.permute.xlu0 %1060
        %1062 = vrot.lane.b32.xlu0 %v764, 32
        %v1063 = vpop.permute.xlu0 %1062
        %1064 = vrot.lane.b32.xlu0 %v765, 32
        %v1065 = vpop.permute.xlu0 %1064
        %1066 = vrot.lane.b32.xlu0 %v766, 32
        %v1067 = vpop.permute.xlu0 %1066
        %1068 = vrot.lane.b32.xlu0 %v767, 32
        %v1069 = vpop.permute.xlu0 %1068
        %1070 = vrot.lane.b32.xlu0 %v768, 32
        %v1071 = vpop.permute.xlu0 %1070
        %1072 = vrot.lane.b32.xlu0 %v769, 32
        %v1073 = vpop.permute.xlu0 %1072
        %1074 = vrot.lane.b32.xlu0 %v770, 32
        %v1075 = vpop.permute.xlu0 %1074
        %1076 = vrot.lane.b32.xlu0 %v771, 32
        %v1077 = vpop.permute.xlu0 %1076
        %1078 = vrot.lane.b32.xlu0 %v772, 32
        %v1079 = vpop.permute.xlu0 %1078
        %1080 = vrot.lane.b32.xlu0 %v773, 32
        %v1081 = vpop.permute.xlu0 %1080
        %1082 = vrot.lane.b32.xlu0 %v774, 32
        %v1083 = vpop.permute.xlu0 %1082
        %1084 = vrot.lane.b32.xlu0 %v775, 32
        %v1085 = vpop.permute.xlu0 %1084
        %1086 = vrot.lane.b32.xlu0 %v776, 32
        %v1087 = vpop.permute.xlu0 %1086
        %1088 = vrot.lane.b32.xlu0 %v777, 32
        %v1089 = vpop.permute.xlu0 %1088
        %1090 = vrot.lane.b32.xlu0 %v778, 32
        %v1091 = vpop.permute.xlu0 %1090
        %1092 = vrot.lane.b32.xlu0 %v779, 32
        %v1093 = vpop.permute.xlu0 %1092
        %1094 = vrot.lane.b32.xlu0 %v780, 32
        %v1095 = vpop.permute.xlu0 %1094
        %1096 = vrot.lane.b32.xlu0 %v781, 32
        %v1097 = vpop.permute.xlu0 %1096
        %1098 = vrot.lane.b32.xlu0 %v782, 32
        %v1099 = vpop.permute.xlu0 %1098
        %1100 = vrot.lane.b32.xlu0 %v783, 32
        %v1101 = vpop.permute.xlu0 %1100
        %1102 = vrot.lane.b32.xlu0 %v784, 32
        %v1103 = vpop.permute.xlu0 %1102
        %1104 = vrot.lane.b32.xlu0 %v785, 32
        %v1105 = vpop.permute.xlu0 %1104
        %1170 = vrot.lane.b32.xlu0 %v978, 64
        %v1171 = vpop.permute.xlu0 %1170
        %1172 = vrot.lane.b32.xlu0 %v979, 64
        %v1173 = vpop.permute.xlu0 %1172
        %1174 = vrot.lane.b32.xlu0 %v980, 64
        %v1175 = vpop.permute.xlu0 %1174
        %1176 = vrot.lane.b32.xlu0 %v981, 64
        %v1177 = vpop.permute.xlu0 %1176
        %1178 = vrot.lane.b32.xlu0 %v982, 64
        %v1179 = vpop.permute.xlu0 %1178
        %1180 = vrot.lane.b32.xlu0 %v983, 64
        %v1181 = vpop.permute.xlu0 %1180
        %1182 = vrot.lane.b32.xlu0 %v984, 64
        %v1183 = vpop.permute.xlu0 %1182
        %1184 = vrot.lane.b32.xlu0 %v985, 64
        %v1185 = vpop.permute.xlu0 %1184
        %1186 = vrot.lane.b32.xlu0 %v986, 64
        %v1187 = vpop.permute.xlu0 %1186
        %1188 = vrot.lane.b32.xlu0 %v987, 64
        %v1189 = vpop.permute.xlu0 %1188
        %1190 = vrot.lane.b32.xlu0 %v988, 64
        %v1191 = vpop.permute.xlu0 %1190
        %1192 = vrot.lane.b32.xlu0 %v989, 64
        %v1193 = vpop.permute.xlu0 %1192
        %1194 = vrot.lane.b32.xlu0 %v990, 64
        %v1195 = vpop.permute.xlu0 %1194
        %1196 = vrot.lane.b32.xlu0 %v991, 64
        %v1197 = vpop.permute.xlu0 %1196
        %1198 = vrot.lane.b32.xlu0 %v992, 64
        %v1199 = vpop.permute.xlu0 %1198
        %1200 = vrot.lane.b32.xlu0 %v993, 64
        %v1201 = vpop.permute.xlu0 %1200
        %1202 = vrot.lane.b32.xlu0 %v994, 64
        %v1203 = vpop.permute.xlu0 %1202
        %1204 = vrot.lane.b32.xlu0 %v995, 64
        %v1205 = vpop.permute.xlu0 %1204
        %1206 = vrot.lane.b32.xlu0 %v996, 64
        %v1207 = vpop.permute.xlu0 %1206
        %1208 = vrot.lane.b32.xlu0 %v997, 64
        %v1209 = vpop.permute.xlu0 %1208
        %1210 = vrot.lane.b32.xlu0 %v998, 64
        %v1211 = vpop.permute.xlu0 %1210
        %1212 = vrot.lane.b32.xlu0 %v999, 64
        %v1213 = vpop.permute.xlu0 %1212
        %1214 = vrot.lane.b32.xlu0 %v1000, 64
        %v1215 = vpop.permute.xlu0 %1214
        %1216 = vrot.lane.b32.xlu0 %v1001, 64
        %v1217 = vpop.permute.xlu0 %1216
        %1218 = vrot.lane.b32.xlu0 %v1002, 64
        %v1219 = vpop.permute.xlu0 %1218
        %1220 = vrot.lane.b32.xlu0 %v1003, 64
        %v1221 = vpop.permute.xlu0 %1220
        %1222 = vrot.lane.b32.xlu0 %v1004, 64
        %v1223 = vpop.permute.xlu0 %1222
        %1224 = vrot.lane.b32.xlu0 %v1005, 64
        %v1225 = vpop.permute.xlu0 %1224
        %1226 = vrot.lane.b32.xlu0 %v1006, 64
        %v1227 = vpop.permute.xlu0 %1226
        %1228 = vrot.lane.b32.xlu0 %v1007, 64
        %v1229 = vpop.permute.xlu0 %1228
        %1230 = vrot.lane.b32.xlu0 %v1008, 64
        %v1231 = vpop.permute.xlu0 %1230
        %1232 = vrot.lane.b32.xlu0 %v1009, 64
        %v1233 = vpop.permute.xlu0 %1232
        %v1266 = vsel %vm170, %v882, %v1043
        %v1267 = vsel %vm170, %v883, %v1045
        %v1268 = vsel %vm170, %v884, %v1047
        %v1269 = vsel %vm170, %v885, %v1049
        %v1270 = vsel %vm170, %v886, %v1051
        %v1271 = vsel %vm170, %v887, %v1053
        %v1272 = vsel %vm170, %v888, %v1055
        %v1273 = vsel %vm170, %v889, %v1057
        %v1274 = vsel %vm170, %v890, %v1059
        %v1275 = vsel %vm170, %v891, %v1061
        %v1276 = vsel %vm170, %v892, %v1063
        %v1277 = vsel %vm170, %v893, %v1065
        %v1278 = vsel %vm170, %v894, %v1067
        %v1279 = vsel %vm170, %v895, %v1069
        %v1280 = vsel %vm170, %v896, %v1071
        %v1281 = vsel %vm170, %v897, %v1073
        %v1282 = vsel %vm170, %v898, %v1075
        %v1283 = vsel %vm170, %v899, %v1077
        %v1284 = vsel %vm170, %v900, %v1079
        %v1285 = vsel %vm170, %v901, %v1081
        %v1286 = vsel %vm170, %v902, %v1083
        %v1287 = vsel %vm170, %v903, %v1085
        %v1288 = vsel %vm170, %v904, %v1087
        %v1289 = vsel %vm170, %v905, %v1089
        %v1290 = vsel %vm170, %v906, %v1091
        %v1291 = vsel %vm170, %v907, %v1093
        %v1292 = vsel %vm170, %v908, %v1095
        %v1293 = vsel %vm170, %v909, %v1097
        %v1294 = vsel %vm170, %v910, %v1099
        %v1295 = vsel %vm170, %v911, %v1101
        %v1296 = vsel %vm170, %v912, %v1103
        %v1297 = vsel %vm170, %v913, %v1105
        %vm1298 = vcmask 523264
        %v1299 = vsel %vm1298, %v1266, %v1171
        %v1300 = vsel %vm1298, %v1267, %v1173
        %v1301 = vsel %vm1298, %v1268, %v1175
        %v1302 = vsel %vm1298, %v1269, %v1177
        %v1303 = vsel %vm1298, %v1270, %v1179
        %v1304 = vsel %vm1298, %v1271, %v1181
        %v1305 = vsel %vm1298, %v1272, %v1183
        %v1306 = vsel %vm1298, %v1273, %v1185
        %v1307 = vsel %vm1298, %v1274, %v1187
        %v1308 = vsel %vm1298, %v1275, %v1189
        %v1309 = vsel %vm1298, %v1276, %v1191
        %v1310 = vsel %vm1298, %v1277, %v1193
        %v1311 = vsel %vm1298, %v1278, %v1195
        %v1312 = vsel %vm1298, %v1279, %v1197
        %v1313 = vsel %vm1298, %v1280, %v1199
        %v1314 = vsel %vm1298, %v1281, %v1201
        %v1315 = vsel %vm1298, %v1282, %v1203
        %v1316 = vsel %vm1298, %v1283, %v1205
        %v1317 = vsel %vm1298, %v1284, %v1207
        %v1318 = vsel %vm1298, %v1285, %v1209
        %v1319 = vsel %vm1298, %v1286, %v1211
        %v1320 = vsel %vm1298, %v1287, %v1213
        %v1321 = vsel %vm1298, %v1288, %v1215
        %v1322 = vsel %vm1298, %v1289, %v1217
        %v1323 = vsel %vm1298, %v1290, %v1219
        %v1324 = vsel %vm1298, %v1291, %v1221
        %v1325 = vsel %vm1298, %v1292, %v1223
        %v1326 = vsel %vm1298, %v1293, %v1225
        %v1327 = vsel %vm1298, %v1294, %v1227
        %v1328 = vsel %vm1298, %v1295, %v1229
        %v1329 = vsel %vm1298, %v1296, %v1231
        %v1330 = vsel %vm1298, %v1297, %v1233
        %v1331 = vpack.c.bf16 %v1300, %v1299
        %v1332 = vpack.c.bf16 %v1302, %v1301
        %v1333 = vpack.c.bf16 %v1304, %v1303
        %v1334 = vpack.c.bf16 %v1306, %v1305
        %v1335 = vpack.c.bf16 %v1308, %v1307
        %v1336 = vpack.c.bf16 %v1310, %v1309
        %v1337 = vpack.c.bf16 %v1312, %v1311
        %v1338 = vpack.c.bf16 %v1314, %v1313
        %v1339 = vpack.c.bf16 %v1316, %v1315
        %v1340 = vpack.c.bf16 %v1318, %v1317
        %v1341 = vpack.c.bf16 %v1320, %v1319
        %v1342 = vpack.c.bf16 %v1322, %v1321
        %v1343 = vpack.c.bf16 %v1324, %v1323
        %v1344 = vpack.c.bf16 %v1326, %v1325
        %v1345 = vpack.c.bf16 %v1328, %v1327
        %v1346 = vpack.c.bf16 %v1330, %v1329
        %v1347 = vld [vmem:[%s1] sm:$0xf]
        %v1348 = vld [vmem:[%s1 + $0x4] sm:$0xf]
        %v1349 = vld [vmem:[%s1 + $0x8] sm:$0xf]
        %v1350 = vld [vmem:[%s1 + $0xc] sm:$0xf]
        %v1351 = vld [vmem:[%s1 + $0x10] sm:$0xf]
        %v1352 = vld [vmem:[%s1 + $0x14] sm:$0xf]
        %v1353 = vld [vmem:[%s1 + $0x18] sm:$0xf]
        %v1354 = vld [vmem:[%s1 + $0x1c] sm:$0xf]
        %v1355 = vld [vmem:[%s1 + $0x20] sm:$0xf]
        %v1356 = vld [vmem:[%s1 + $0x24] sm:$0xf]
        %v1357 = vld [vmem:[%s1 + $0x28] sm:$0xf]
        %v1358 = vld [vmem:[%s1 + $0x2c] sm:$0xf]
        %v1359 = vld [vmem:[#allocation2 + $0x107] sm:$0xff]
        %v1360 = vld [vmem:[#allocation2 + $0x10f] sm:$0xff]
        %v1361 = vld [vmem:[#allocation2 + $0x108] sm:$0xff]
        %v1362 = vld [vmem:[#allocation2 + $0x110] sm:$0xff]
        %v1363 = vld [vmem:[#allocation2 + $0x109] sm:$0xff]
        %v1364 = vld [vmem:[#allocation2 + $0x111] sm:$0xff]
        %v1365 = vsel %vm850, %v724, 0.0
        %v1366 = vsel %vm851, %v725, 0.0
        %v1367 = vsel %vm852, %v726, 0.0
        %v1368 = vsel %vm853, %v727, 0.0
        %v1369 = vsel %vm854, %v728, 0.0
        %v1370 = vsel %vm855, %v729, 0.0
        %v1371 = vsel %vm856, %v730, 0.0
        %v1372 = vsel %vm857, %v731, 0.0
        %v1373 = vsel %vm858, %v732, 0.0
        %v1374 = vsel %vm859, %v733, 0.0
        %v1375 = vsel %vm860, %v734, 0.0
        %v1376 = vsel %vm861, %v735, 0.0
        %v1377 = vsel %vm862, %v736, 0.0
        %v1378 = vsel %vm863, %v737, 0.0
        %v1379 = vsel %vm864, %v738, 0.0
        %v1380 = vsel %vm865, %v739, 0.0
        %v1381 = vsel %vm866, %v740, 0.0
        %v1382 = vsel %vm867, %v741, 0.0
        %v1383 = vsel %vm868, %v742, 0.0
        %v1384 = vsel %vm869, %v743, 0.0
        %v1385 = vsel %vm870, %v744, 0.0
        %v1386 = vsel %vm871, %v745, 0.0
        %v1387 = vsel %vm872, %v746, 0.0
        %v1388 = vsel %vm873, %v747, 0.0
        %v1389 = vsel %vm874, %v748, 0.0
        %v1390 = vsel %vm875, %v749, 0.0
        %v1391 = vsel %vm876, %v750, 0.0
        %v1392 = vsel %vm877, %v751, 0.0
        %v1393 = vsel %vm878, %v752, 0.0
        %v1394 = vsel %vm879, %v753, 0.0
        %v1395 = vsel %vm880, %v1359, 0.0
        %v1396 = vsel %vm881, %v1360, 0.0
        %v1397 = vsel %vm946, %v788, 0.0
        %v1398 = vsel %vm947, %v789, 0.0
        %v1399 = vsel %vm948, %v790, 0.0
        %v1400 = vsel %vm949, %v791, 0.0
        %v1401 = vsel %vm950, %v792, 0.0
        %v1402 = vsel %vm951, %v793, 0.0
        %v1403 = vsel %vm952, %v794, 0.0
        %v1404 = vsel %vm953, %v795, 0.0
        %v1405 = vsel %vm954, %v796, 0.0
        %v1406 = vsel %vm955, %v797, 0.0
        %v1407 = vsel %vm956, %v798, 0.0
        %v1408 = vsel %vm957, %v799, 0.0
        %v1409 = vsel %vm958, %v800, 0.0
        %v1410 = vsel %vm959, %v801, 0.0
        %v1411 = vsel %vm960, %v802, 0.0
        %v1412 = vsel %vm961, %v803, 0.0
        %v1413 = vsel %vm962, %v804, 0.0
        %v1414 = vsel %vm963, %v805, 0.0
        %v1415 = vsel %vm964, %v806, 0.0
        %v1416 = vsel %vm965, %v807, 0.0
        %v1417 = vsel %vm966, %v808, 0.0
        %v1418 = vsel %vm967, %v809, 0.0
        %v1419 = vsel %vm968, %v810, 0.0
        %v1420 = vsel %vm969, %v811, 0.0
        %v1421 = vsel %vm970, %v812, 0.0
        %v1422 = vsel %vm971, %v813, 0.0
        %v1423 = vsel %vm972, %v814, 0.0
        %v1424 = vsel %vm973, %v815, 0.0
        %v1425 = vsel %vm974, %v816, 0.0
        %v1426 = vsel %vm975, %v817, 0.0
        %v1427 = vsel %vm976, %v1363, 0.0
        %v1428 = vsel %vm977, %v1364, 0.0
        %1431 = vrot.lane.b32.xlu0 %v1361, 32
        %v1432 = vpop.permute.xlu0 %1431
        %1433 = vrot.lane.b32.xlu0 %v1362, 32
        %v1434 = vpop.permute.xlu0 %1433
        %1469 = vrot.lane.b32.xlu0 %v1397, 64
        %v1470 = vpop.permute.xlu0 %1469
        %1471 = vrot.lane.b32.xlu0 %v1398, 64
        %v1472 = vpop.permute.xlu0 %1471
        %1473 = vrot.lane.b32.xlu0 %v1399, 64
        %v1474 = vpop.permute.xlu0 %1473
        %1475 = vrot.lane.b32.xlu0 %v1400, 64
        %v1476 = vpop.permute.xlu0 %1475
        %1477 = vrot.lane.b32.xlu0 %v1401, 64
        %v1478 = vpop.permute.xlu0 %1477
        %1479 = vrot.lane.b32.xlu0 %v1402, 64
        %v1480 = vpop.permute.xlu0 %1479
        %1481 = vrot.lane.b32.xlu0 %v1403, 64
        %v1482 = vpop.permute.xlu0 %1481
        %1483 = vrot.lane.b32.xlu0 %v1404, 64
        %v1484 = vpop.permute.xlu0 %1483
        %1485 = vrot.lane.b32.xlu0 %v1405, 64
        %v1486 = vpop.permute.xlu0 %1485
        %1487 = vrot.lane.b32.xlu0 %v1406, 64
        %v1488 = vpop.permute.xlu0 %1487
        %1489 = vrot.lane.b32.xlu0 %v1407, 64
        %v1490 = vpop.permute.xlu0 %1489
        %1491 = vrot.lane.b32.xlu0 %v1408, 64
        %v1492 = vpop.permute.xlu0 %1491
        %1493 = vrot.lane.b32.xlu0 %v1409, 64
        %v1494 = vpop.permute.xlu0 %1493
        %1495 = vrot.lane.b32.xlu0 %v1410, 64
        %v1496 = vpop.permute.xlu0 %1495
        %1497 = vrot.lane.b32.xlu0 %v1411, 64
        %v1498 = vpop.permute.xlu0 %1497
        %1499 = vrot.lane.b32.xlu0 %v1412, 64
        %v1500 = vpop.permute.xlu0 %1499
        %1501 = vrot.lane.b32.xlu0 %v1413, 64
        %v1502 = vpop.permute.xlu0 %1501
        %1503 = vrot.lane.b32.xlu0 %v1414, 64
        %v1504 = vpop.permute.xlu0 %1503
        %1505 = vrot.lane.b32.xlu0 %v1415, 64
        %v1506 = vpop.permute.xlu0 %1505
        %1507 = vrot.lane.b32.xlu0 %v1416, 64
        %v1508 = vpop.permute.xlu0 %1507
        %1509 = vrot.lane.b32.xlu0 %v1417, 64
        %v1510 = vpop.permute.xlu0 %1509
        %1511 = vrot.lane.b32.xlu0 %v1418, 64
        %v1512 = vpop.permute.xlu0 %1511
        %1513 = vrot.lane.b32.xlu0 %v1419, 64
        %v1514 = vpop.permute.xlu0 %1513
        %1515 = vrot.lane.b32.xlu0 %v1420, 64
        %v1516 = vpop.permute.xlu0 %1515
        %1517 = vrot.lane.b32.xlu0 %v1421, 64
        %v1518 = vpop.permute.xlu0 %1517
        %1519 = vrot.lane.b32.xlu0 %v1422, 64
        %v1520 = vpop.permute.xlu0 %1519
        %1521 = vrot.lane.b32.xlu0 %v1423, 64
        %v1522 = vpop.permute.xlu0 %1521
        %1523 = vrot.lane.b32.xlu0 %v1424, 64
        %v1524 = vpop.permute.xlu0 %1523
        %1525 = vrot.lane.b32.xlu0 %v1425, 64
        %v1526 = vpop.permute.xlu0 %1525
        %1527 = vrot.lane.b32.xlu0 %v1426, 64
        %v1528 = vpop.permute.xlu0 %1527
        %1529 = vrot.lane.b32.xlu0 %v1427, 64
        %v1530 = vpop.permute.xlu0 %1529
        %1531 = vrot.lane.b32.xlu0 %v1428, 64
        %v1532 = vpop.permute.xlu0 %1531
        %v1565 = vsel %vm170, %v1365, %v1047
        %v1566 = vsel %vm170, %v1366, %v1049
        %v1567 = vsel %vm170, %v1367, %v1051
        %v1568 = vsel %vm170, %v1368, %v1053
        %v1569 = vsel %vm170, %v1369, %v1055
        %v1570 = vsel %vm170, %v1370, %v1057
        %v1571 = vsel %vm170, %v1371, %v1059
        %v1572 = vsel %vm170, %v1372, %v1061
        %v1573 = vsel %vm170, %v1373, %v1063
        %v1574 = vsel %vm170, %v1374, %v1065
        %v1575 = vsel %vm170, %v1375, %v1067
        %v1576 = vsel %vm170, %v1376, %v1069
        %v1577 = vsel %vm170, %v1377, %v1071
        %v1578 = vsel %vm170, %v1378, %v1073
        %v1579 = vsel %vm170, %v1379, %v1075
        %v1580 = vsel %vm170, %v1380, %v1077
        %v1581 = vsel %vm170, %v1381, %v1079
        %v1582 = vsel %vm170, %v1382, %v1081
        %v1583 = vsel %vm170, %v1383, %v1083
        %v1584 = vsel %vm170, %v1384, %v1085
        %v1585 = vsel %vm170, %v1385, %v1087
        %v1586 = vsel %vm170, %v1386, %v1089
        %v1587 = vsel %vm170, %v1387, %v1091
        %v1588 = vsel %vm170, %v1388, %v1093
        %v1589 = vsel %vm170, %v1389, %v1095
        %v1590 = vsel %vm170, %v1390, %v1097
        %v1591 = vsel %vm170, %v1391, %v1099
        %v1592 = vsel %vm170, %v1392, %v1101
        %v1593 = vsel %vm170, %v1393, %v1103
        %v1594 = vsel %vm170, %v1394, %v1105
        %v1595 = vsel %vm170, %v1395, %v1432
        %v1596 = vsel %vm170, %v1396, %v1434
        %v1597 = vsel %vm1298, %v1565, %v1470
        %v1598 = vsel %vm1298, %v1566, %v1472
        %v1599 = vsel %vm1298, %v1567, %v1474
        %v1600 = vsel %vm1298, %v1568, %v1476
        %v1601 = vsel %vm1298, %v1569, %v1478
        %v1602 = vsel %vm1298, %v1570, %v1480
        %v1603 = vsel %vm1298, %v1571, %v1482
        %v1604 = vsel %vm1298, %v1572, %v1484
        %v1605 = vsel %vm1298, %v1573, %v1486
        %v1606 = vsel %vm1298, %v1574, %v1488
        %v1607 = vsel %vm1298, %v1575, %v1490
        %v1608 = vsel %vm1298, %v1576, %v1492
        %v1609 = vsel %vm1298, %v1577, %v1494
        %v1610 = vsel %vm1298, %v1578, %v1496
        %v1611 = vsel %vm1298, %v1579, %v1498
        %v1612 = vsel %vm1298, %v1580, %v1500
        %v1613 = vsel %vm1298, %v1581, %v1502
        %v1614 = vsel %vm1298, %v1582, %v1504
        %v1615 = vsel %vm1298, %v1583, %v1506
        %v1616 = vsel %vm1298, %v1584, %v1508
        %v1617 = vsel %vm1298, %v1585, %v1510
        %v1618 = vsel %vm1298, %v1586, %v1512
        %v1619 = vsel %vm1298, %v1587, %v1514
        %v1620 = vsel %vm1298, %v1588, %v1516
        %v1621 = vsel %vm1298, %v1589, %v1518
        %v1622 = vsel %vm1298, %v1590, %v1520
        %v1623 = vsel %vm1298, %v1591, %v1522
        %v1624 = vsel %vm1298, %v1592, %v1524
        %v1625 = vsel %vm1298, %v1593, %v1526
        %v1626 = vsel %vm1298, %v1594, %v1528
        %v1627 = vsel %vm1298, %v1595, %v1530
        %v1628 = vsel %vm1298, %v1596, %v1532
        %v1629 = vpack.c.bf16 %v1598, %v1597
        %v1630 = vpack.c.bf16 %v1600, %v1599
        %v1631 = vpack.c.bf16 %v1602, %v1601
        %v1632 = vpack.c.bf16 %v1604, %v1603
        %v1633 = vpack.c.bf16 %v1606, %v1605
        %v1634 = vpack.c.bf16 %v1608, %v1607
        %v1635 = vpack.c.bf16 %v1610, %v1609
        %v1636 = vpack.c.bf16 %v1612, %v1611
        %v1637 = vpack.c.bf16 %v1614, %v1613
        %v1638 = vpack.c.bf16 %v1616, %v1615
        %v1639 = vpack.c.bf16 %v1618, %v1617
        %v1640 = vpack.c.bf16 %v1620, %v1619
        %v1641 = vpack.c.bf16 %v1622, %v1621
        %v1642 = vpack.c.bf16 %v1624, %v1623
        %v1643 = vpack.c.bf16 %v1626, %v1625
        %v1644 = vpack.c.bf16 %v1628, %v1627
        %s1645 = scalar_lea.vmem %s1, 48
        %v1646 = vld [vmem:[%s1645] sm:$0xf]
        %v1647 = vld [vmem:[%s1645 + $0x4] sm:$0xf]
        %v1648 = vld [vmem:[%s1645 + $0x8] sm:$0xf]
        %v1649 = vld [vmem:[%s1645 + $0xc] sm:$0xf]
        %v1650 = vld [vmem:[%s1645 + $0x10] sm:$0xf]
        %v1651 = vld [vmem:[%s1645 + $0x14] sm:$0xf]
        %v1652 = vld [vmem:[%s1645 + $0x18] sm:$0xf]
        %v1653 = vld [vmem:[%s1645 + $0x1c] sm:$0xf]
        %v1654 = vld [vmem:[%s1645 + $0x20] sm:$0xf]
        %v1655 = vld [vmem:[%s1645 + $0x24] sm:$0xf]
        %v1656 = vld [vmem:[%s1645 + $0x28] sm:$0xf]
        %v1657 = vld [vmem:[%s1645 + $0x2c] sm:$0xf]
        %v1670 = vunpack.c.l.b16 %v1646
        %v1671 = vunpack.c.l.b16 %v1647
        %v1672 = vunpack.c.l.b16 %v1648
        %v1673 = vunpack.c.l.b16 %v1649
        %v1674 = vunpack.c.l.b16 %v1650
        %v1675 = vunpack.c.l.b16 %v1651
        %v1676 = vunpack.c.l.b16 %v1652
        %v1677 = vunpack.c.l.b16 %v1653
        %v1678 = vunpack.c.l.b16 %v1654
        %v1679 = vunpack.c.l.b16 %v1655
        %v1680 = vunpack.c.l.b16 %v1656
        %v1681 = vunpack.c.l.b16 %v1657
        %v1682 = vpack.c.b16 %v1671, %v1670
        %v1683 = vpack.c.b16 %v1673, %v1672
        %v1684 = vpack.c.b16 %v1675, %v1674
        %v1685 = vpack.c.b16 %v1677, %v1676
        %v1686 = vpack.c.b16 %v1679, %v1678
        %v1687 = vpack.c.b16 %v1681, %v1680
        %vm1694 = vcmask 785408
        %v1696 = vsel %vm1694, %v1629, 0
        %v1699 = vsel %vm1694, %v1630, 0
        %v1702 = vsel %vm1694, %v1631, 0
        %v1705 = vsel %vm1694, %v1632, 0
        %v1708 = vsel %vm1694, %v1633, 0
        %v1711 = vsel %vm1694, %v1634, 0
        %v1714 = vsel %vm1694, %v1635, 0
        %v1717 = vsel %vm1694, %v1636, 0
        %v1720 = vsel %vm1694, %v1637, 0
        %v1723 = vsel %vm1694, %v1638, 0
        %v1726 = vsel %vm1694, %v1639, 0
        %v1729 = vsel %vm1694, %v1640, 0
        %v1732 = vsel %vm1694, %v1641, 0
        %v1735 = vsel %vm1694, %v1642, 0
        %v1738 = vsel %vm1694, %v1643, 0
        %v1741 = vsel %vm1694, %v1644, 0
        %1743 = vmatprep.subr.bf16.mxu0 0
        %1744 = vmatpush1.bf16.msra.mxu0 %v1682
        %1745 = vmatprep.subr.bf16.mxu0 0
        %1746 = vmatpush1.bf16.msra.mxu0 %v1683
        %1747 = vmatprep.subr.bf16.mxu0 0
        %1748 = vmatpush1.bf16.msra.mxu0 %v1684
        %1749 = vmatprep.subr.bf16.mxu0 0
        %1750 = vmatpush1.bf16.msra.mxu0 %v1685
        %1751 = vmatprep.subr.bf16.mxu0 0
        %1752 = vmatpush1.bf16.msra.mxu0 %v1686
        %1753 = vmatprep.subr.bf16.mxu0 0
        %1754 = vmatpush1.bf16.msra.mxu0 %v1687
        %1755 = vmatprep.subr.bf16.mxu0 0
        %1756 = vmatpush1.bf16.msra.mxu0 0
        %1757 = vmatprep.subr.bf16.mxu0 0
        %1758 = vmatpush1.bf16.msra.mxu0 0
        %1759 = vmatprep.subr.bf16.mxu0 0
        %1760 = vmatpush1.bf16.msra.mxu0 0
        %1761 = vmatprep.subr.bf16.mxu0 0
        %1762 = vmatpush1.bf16.msra.mxu0 0
        %1763 = vmatprep.subr.bf16.mxu0 0
        %1764 = vmatpush1.bf16.msra.mxu0 0
        %1765 = vmatprep.subr.bf16.mxu0 0
        %1766 = vmatpush1.bf16.msra.mxu0 0
        %1767 = vmatprep.subr.bf16.mxu0 0
        %1768 = vmatpush1.bf16.msra.mxu0 0
        %1769 = vmatprep.subr.bf16.mxu0 0
        %1770 = vmatpush1.bf16.msra.mxu0 0
        %1771 = vmatprep.subr.bf16.mxu0 0
        %1772 = vmatpush1.bf16.msra.mxu0 0
        %1773 = vmatprep.subr.bf16.mxu0 0
        %1774 = vmatpush1.bf16.msra.mxu0 0
        %1775 = vmatprep.mubr.bf16.mxu0 0
        %1776 = vmatmul.mubr.bf16.gmra.mrb[0].mxu0 %v1696
        %v1777 = vpop.f32.mrb[0].mxu0
        %v1778 = vadd.f32 0.0, %v1777
        %v1779 = vpop.f32.mrb[0].mxu0
        %v1780 = vpop.f32.mrb[0].mxu0
        %v1781 = vadd.f32 0.0, %v1780
        %v1782 = vpop.f32.mrb[0].mxu0
        %1783 = vmatprep.mubr.bf16.mxu0 0
        %1784 = vmatmul.mubr.bf16.gmra.mrb[0].mxu0 %v1699
        %v1785 = vpop.f32.mrb[0].mxu0
        %v1786 = vadd.f32 0.0, %v1785
        %v1787 = vpop.f32.mrb[0].mxu0
        %v1788 = vpop.f32.mrb[0].mxu0
        %v1789 = vadd.f32 0.0, %v1788
        %v1790 = vpop.f32.mrb[0].mxu0
        %1791 = vmatprep.mubr.bf16.mxu0 0
        %1792 = vmatmul.mubr.bf16.gmra.mrb[0].mxu0 %v1702
        %v1793 = vpop.f32.mrb[0].mxu0
        %v1794 = vadd.f32 0.0, %v1793
        %v1795 = vpop.f32.mrb[0].mxu0
        %v1796 = vpop.f32.mrb[0].mxu0
        %v1797 = vadd.f32 0.0, %v1796
        %v1798 = vpop.f32.mrb[0].mxu0
        %1799 = vmatprep.mubr.bf16.mxu0 0
        %1800 = vmatmul.mubr.bf16.gmra.mrb[0].mxu0 %v1705
        %v1801 = vpop.f32.mrb[0].mxu0
        %v1802 = vadd.f32 0.0, %v1801
        %v1803 = vpop.f32.mrb[0].mxu0
        %v1804 = vpop.f32.mrb[0].mxu0
        %v1805 = vadd.f32 0.0, %v1804
        %v1806 = vpop.f32.mrb[0].mxu0
        %1807 = vmatprep.mubr.bf16.mxu0 0
        %1808 = vmatmul.mubr.bf16.gmra.mrb[0].mxu0 %v1708
        %v1809 = vpop.f32.mrb[0].mxu0
        %v1810 = vadd.f32 0.0, %v1809
        %v1811 = vpop.f32.mrb[0].mxu0
        %v1812 = vpop.f32.mrb[0].mxu0
        %v1813 = vadd.f32 0.0, %v1812
        %v1814 = vpop.f32.mrb[0].mxu0
        %1815 = vmatprep.mubr.bf16.mxu0 0
        %1816 = vmatmul.mubr.bf16.gmra.mrb[0].mxu0 %v1711
        %v1817 = vpop.f32.mrb[0].mxu0
        %v1818 = vadd.f32 0.0, %v1817
        %v1819 = vpop.f32.mrb[0].mxu0
        %v1820 = vpop.f32.mrb[0].mxu0
        %v1821 = vadd.f32 0.0, %v1820
        %v1822 = vpop.f32.mrb[0].mxu0
        %1823 = vmatprep.mubr.bf16.mxu0 0
        %1824 = vmatmul.mubr.bf16.gmra.mrb[0].mxu0 %v1714
        %v1825 = vpop.f32.mrb[0].mxu0
        %v1826 = vadd.f32 0.0, %v1825
        %v1827 = vpop.f32.mrb[0].mxu0
        %v1828 = vpop.f32.mrb[0].mxu0
        %v1829 = vadd.f32 0.0, %v1828
        %v1830 = vpop.f32.mrb[0].mxu0
        %1831 = vmatprep.mubr.bf16.mxu0 0
        %1832 = vmatmul.mubr.bf16.gmra.mrb[0].mxu0 %v1717
        %v1833 = vpop.f32.mrb[0].mxu0
        %v1834 = vadd.f32 0.0, %v1833
        %v1835 = vpop.f32.mrb[0].mxu0
        %v1836 = vpop.f32.mrb[0].mxu0
        %v1837 = vadd.f32 0.0, %v1836
        %v1838 = vpop.f32.mrb[0].mxu0
        %1839 = vmatprep.mubr.bf16.mxu0 0
        %1840 = vmatmul.mubr.bf16.gmra.mrb[0].mxu0 %v1720
        %v1841 = vpop.f32.mrb[0].mxu0
        %v1842 = vadd.f32 0.0, %v1841
        %v1843 = vpop.f32.mrb[0].mxu0
        %v1844 = vpop.f32.mrb[0].mxu0
        %v1845 = vadd.f32 0.0, %v1844
        %v1846 = vpop.f32.mrb[0].mxu0
        %1847 = vmatprep.mubr.bf16.mxu0 0
        %1848 = vmatmul.mubr.bf16.gmra.mrb[0].mxu0 %v1723
        %v1849 = vpop.f32.mrb[0].mxu0
        %v1850 = vadd.f32 0.0, %v1849
        %v1851 = vpop.f32.mrb[0].mxu0
        %v1852 = vpop.f32.mrb[0].mxu0
        %v1853 = vadd.f32 0.0, %v1852
        %v1854 = vpop.f32.mrb[0].mxu0
        %1855 = vmatprep.mubr.bf16.mxu0 0
        %1856 = vmatmul.mubr.bf16.gmra.mrb[0].mxu0 %v1726
        %v1857 = vpop.f32.mrb[0].mxu0
        %v1858 = vadd.f32 0.0, %v1857
        %v1859 = vpop.f32.mrb[0].mxu0
        %v1860 = vpop.f32.mrb[0].mxu0
        %v1861 = vadd.f32 0.0, %v1860
        %v1862 = vpop.f32.mrb[0].mxu0
        %1863 = vmatprep.mubr.bf16.mxu0 0
        %1864 = vmatmul.mubr.bf16.gmra.mrb[0].mxu0 %v1729
        %v1865 = vpop.f32.mrb[0].mxu0
        %v1866 = vadd.f32 0.0, %v1865
        %v1867 = vpop.f32.mrb[0].mxu0
        %v1868 = vpop.f32.mrb[0].mxu0
        %v1869 = vadd.f32 0.0, %v1868
        %v1870 = vpop.f32.mrb[0].mxu0
        %1871 = vmatprep.mubr.bf16.mxu0 0
        %1872 = vmatmul.mubr.bf16.gmra.mrb[0].mxu0 %v1732
        %v1873 = vpop.f32.mrb[0].mxu0
        %v1874 = vadd.f32 0.0, %v1873
        %v1875 = vpop.f32.mrb[0].mxu0
        %v1876 = vpop.f32.mrb[0].mxu0
        %v1877 = vadd.f32 0.0, %v1876
        %v1878 = vpop.f32.mrb[0].mxu0
        %1879 = vmatprep.mubr.bf16.mxu0 0
        %1880 = vmatmul.mubr.bf16.gmra.mrb[0].mxu0 %v1735
        %v1881 = vpop.f32.mrb[0].mxu0
        %v1882 = vadd.f32 0.0, %v1881
        %v1883 = vpop.f32.mrb[0].mxu0
        %v1884 = vpop.f32.mrb[0].mxu0
        %v1885 = vadd.f32 0.0, %v1884
        %v1886 = vpop.f32.mrb[0].mxu0
        %1887 = vmatprep.mubr.bf16.mxu0 0
        %1888 = vmatmul.mubr.bf16.gmra.mrb[0].mxu0 %v1738
        %v1889 = vpop.f32.mrb[0].mxu0
        %v1890 = vadd.f32 0.0, %v1889
        %v1891 = vpop.f32.mrb[0].mxu0
        %v1892 = vpop.f32.mrb[0].mxu0
        %v1893 = vadd.f32 0.0, %v1892
        %v1894 = vpop.f32.mrb[0].mxu0
        %1895 = vmatprep.mubr.bf16.mxu0 0
        %1896 = vmatmul.mubr.bf16.gmra.mrb[0].mxu0 %v1741
        %v1897 = vpop.f32.mrb[0].mxu0
        %v1898 = vadd.f32 0.0, %v1897
        %v1899 = vpop.f32.mrb[0].mxu0
        %v1900 = vpop.f32.mrb[0].mxu0
        %v1901 = vadd.f32 0.0, %v1900
        %v1902 = vpop.f32.mrb[0].mxu0
        %1903 = vdwg.mxu0
        %v1916 = vunpack.c.l.b16 %v1347
        %v1917 = vunpack.c.l.b16 %v1348
        %v1918 = vunpack.c.l.b16 %v1349
        %v1919 = vunpack.c.l.b16 %v1350
        %v1920 = vunpack.c.l.b16 %v1351
        %v1921 = vunpack.c.l.b16 %v1352
        %v1922 = vunpack.c.l.b16 %v1353
        %v1923 = vunpack.c.l.b16 %v1354
        %v1924 = vunpack.c.l.b16 %v1355
        %v1925 = vunpack.c.l.b16 %v1356
        %v1926 = vunpack.c.l.b16 %v1357
        %v1927 = vunpack.c.l.b16 %v1358
        %v1928 = vpack.c.b16 %v1917, %v1916
        %v1929 = vpack.c.b16 %v1919, %v1918
        %v1930 = vpack.c.b16 %v1921, %v1920
        %v1931 = vpack.c.b16 %v1923, %v1922
        %v1932 = vpack.c.b16 %v1925, %v1924
        %v1933 = vpack.c.b16 %v1927, %v1926
        %v1941 = vsel %vm1694, %v1331, 0
        %v1944 = vsel %vm1694, %v1332, 0
        %v1947 = vsel %vm1694, %v1333, 0
        %v1950 = vsel %vm1694, %v1334, 0
        %v1953 = vsel %vm1694, %v1335, 0
        %v1956 = vsel %vm1694, %v1336, 0
        %v1959 = vsel %vm1694, %v1337, 0
        %v1962 = vsel %vm1694, %v1338, 0
        %v1965 = vsel %vm1694, %v1339, 0
        %v1968 = vsel %vm1694, %v1340, 0
        %v1971 = vsel %vm1694, %v1341, 0
        %v1974 = vsel %vm1694, %v1342, 0
        %v1977 = vsel %vm1694, %v1343, 0
        %v1980 = vsel %vm1694, %v1344, 0
        %v1983 = vsel %vm1694, %v1345, 0
        %v1986 = vsel %vm1694, %v1346, 0
        %1988 = vmatprep.subr.bf16.mxu0 0
        %1989 = vmatpush1.bf16.msra.mxu0 %v1928
        %1990 = vmatprep.subr.bf16.mxu0 0
        %1991 = vmatpush1.bf16.msra.mxu0 %v1929
        %1992 = vmatprep.subr.bf16.mxu0 0
        %1993 = vmatpush1.bf16.msra.mxu0 %v1930
        %1994 = vmatprep.subr.bf16.mxu0 0
        %1995 = vmatpush1.bf16.msra.mxu0 %v1931
        %1996 = vmatprep.subr.bf16.mxu0 0
        %1997 = vmatpush1.bf16.msra.mxu0 %v1932
        %1998 = vmatprep.subr.bf16.mxu0 0
        %1999 = vmatpush1.bf16.msra.mxu0 %v1933
        %2000 = vmatprep.subr.bf16.mxu0 0
        %2001 = vmatpush1.bf16.msra.mxu0 0
        %2002 = vmatprep.subr.bf16.mxu0 0
        %2003 = vmatpush1.bf16.msra.mxu0 0
        %2004 = vmatprep.subr.bf16.mxu0 0
        %2005 = vmatpush1.bf16.msra.mxu0 0
        %2006 = vmatprep.subr.bf16.mxu0 0
        %2007 = vmatpush1.bf16.msra.mxu0 0
        %2008 = vmatprep.subr.bf16.mxu0 0
        %2009 = vmatpush1.bf16.msra.mxu0 0
        %2010 = vmatprep.subr.bf16.mxu0 0
        %2011 = vmatpush1.bf16.msra.mxu0 0
        %2012 = vmatprep.subr.bf16.mxu0 0
        %2013 = vmatpush1.bf16.msra.mxu0 0
        %2014 = vmatprep.subr.bf16.mxu0 0
        %2015 = vmatpush1.bf16.msra.mxu0 0
        %2016 = vmatprep.subr.bf16.mxu0 0
        %2017 = vmatpush1.bf16.msra.mxu0 0
        %2018 = vmatprep.subr.bf16.mxu0 0
        %2019 = vmatpush1.bf16.msra.mxu0 0
        %2020 = vmatprep.mubr.bf16.mxu0 0
        %2021 = vmatmul.mubr.bf16.gmra.mrb[0].mxu0 %v1941
        %v2022 = vpop.f32.mrb[0].mxu0
        %v2023 = vadd.f32 %v1778, %v2022
        %v2024 = vpop.f32.mrb[0].mxu0
        %v2025 = vpop.f32.mrb[0].mxu0
        %v2026 = vadd.f32 %v1781, %v2025
        %v2027 = vpop.f32.mrb[0].mxu0
        %2028 = vmatprep.mubr.bf16.mxu0 0
        %2029 = vmatmul.mubr.bf16.gmra.mrb[0].mxu0 %v1944
        %v2030 = vpop.f32.mrb[0].mxu0
        %v2031 = vadd.f32 %v1786, %v2030
        %v2032 = vpop.f32.mrb[0].mxu0
        %v2033 = vpop.f32.mrb[0].mxu0
        %v2034 = vadd.f32 %v1789, %v2033
        %v2035 = vpop.f32.mrb[0].mxu0
        %2036 = vmatprep.mubr.bf16.mxu0 0
        %2037 = vmatmul.mubr.bf16.gmra.mrb[0].mxu0 %v1947
        %v2038 = vpop.f32.mrb[0].mxu0
        %v2039 = vadd.f32 %v1794, %v2038
        %v2040 = vpop.f32.mrb[0].mxu0
        %v2041 = vpop.f32.mrb[0].mxu0
        %v2042 = vadd.f32 %v1797, %v2041
        %v2043 = vpop.f32.mrb[0].mxu0
        %2044 = vmatprep.mubr.bf16.mxu0 0
        %2045 = vmatmul.mubr.bf16.gmra.mrb[0].mxu0 %v1950
        %v2046 = vpop.f32.mrb[0].mxu0
        %v2047 = vadd.f32 %v1802, %v2046
        %v2048 = vpop.f32.mrb[0].mxu0
        %v2049 = vpop.f32.mrb[0].mxu0
        %v2050 = vadd.f32 %v1805, %v2049
        %v2051 = vpop.f32.mrb[0].mxu0
        %2052 = vmatprep.mubr.bf16.mxu0 0
        %2053 = vmatmul.mubr.bf16.gmra.mrb[0].mxu0 %v1953
        %v2054 = vpop.f32.mrb[0].mxu0
        %v2055 = vadd.f32 %v1810, %v2054
        %v2056 = vpop.f32.mrb[0].mxu0
        %v2057 = vpop.f32.mrb[0].mxu0
        %v2058 = vadd.f32 %v1813, %v2057
        %v2059 = vpop.f32.mrb[0].mxu0
        %2060 = vmatprep.mubr.bf16.mxu0 0
        %2061 = vmatmul.mubr.bf16.gmra.mrb[0].mxu0 %v1956
        %v2062 = vpop.f32.mrb[0].mxu0
        %v2063 = vadd.f32 %v1818, %v2062
        %v2064 = vpop.f32.mrb[0].mxu0
        %v2065 = vpop.f32.mrb[0].mxu0
        %v2066 = vadd.f32 %v1821, %v2065
        %v2067 = vpop.f32.mrb[0].mxu0
        %2068 = vmatprep.mubr.bf16.mxu0 0
        %2069 = vmatmul.mubr.bf16.gmra.mrb[0].mxu0 %v1959
        %v2070 = vpop.f32.mrb[0].mxu0
        %v2071 = vadd.f32 %v1826, %v2070
        %v2072 = vpop.f32.mrb[0].mxu0
        %v2073 = vpop.f32.mrb[0].mxu0
        %v2074 = vadd.f32 %v1829, %v2073
        %v2075 = vpop.f32.mrb[0].mxu0
        %2076 = vmatprep.mubr.bf16.mxu0 0
        %2077 = vmatmul.mubr.bf16.gmra.mrb[0].mxu0 %v1962
        %v2078 = vpop.f32.mrb[0].mxu0
        %v2079 = vadd.f32 %v1834, %v2078
        %v2080 = vpop.f32.mrb[0].mxu0
        %v2081 = vpop.f32.mrb[0].mxu0
        %v2082 = vadd.f32 %v1837, %v2081
        %v2083 = vpop.f32.mrb[0].mxu0
        %2084 = vmatprep.mubr.bf16.mxu0 0
        %2085 = vmatmul.mubr.bf16.gmra.mrb[0].mxu0 %v1965
        %v2086 = vpop.f32.mrb[0].mxu0
        %v2087 = vadd.f32 %v1842, %v2086
        %v2088 = vpop.f32.mrb[0].mxu0
        %v2089 = vpop.f32.mrb[0].mxu0
        %v2090 = vadd.f32 %v1845, %v2089
        %v2091 = vpop.f32.mrb[0].mxu0
        %2092 = vmatprep.mubr.bf16.mxu0 0
        %2093 = vmatmul.mubr.bf16.gmra.mrb[0].mxu0 %v1968
        %v2094 = vpop.f32.mrb[0].mxu0
        %v2095 = vadd.f32 %v1850, %v2094
        %v2096 = vpop.f32.mrb[0].mxu0
        %v2097 = vpop.f32.mrb[0].mxu0
        %v2098 = vadd.f32 %v1853, %v2097
        %v2099 = vpop.f32.mrb[0].mxu0
        %2100 = vmatprep.mubr.bf16.mxu0 0
        %2101 = vmatmul.mubr.bf16.gmra.mrb[0].mxu0 %v1971
        %v2102 = vpop.f32.mrb[0].mxu0
        %v2103 = vadd.f32 %v1858, %v2102
        %v2104 = vpop.f32.mrb[0].mxu0
        %v2105 = vpop.f32.mrb[0].mxu0
        %v2106 = vadd.f32 %v1861, %v2105
        %v2107 = vpop.f32.mrb[0].mxu0
        %2108 = vmatprep.mubr.bf16.mxu0 0
        %2109 = vmatmul.mubr.bf16.gmra.mrb[0].mxu0 %v1974
        %v2110 = vpop.f32.mrb[0].mxu0
        %v2111 = vadd.f32 %v1866, %v2110
        %v2112 = vpop.f32.mrb[0].mxu0
        %v2113 = vpop.f32.mrb[0].mxu0
        %v2114 = vadd.f32 %v1869, %v2113
        %v2115 = vpop.f32.mrb[0].mxu0
        %2116 = vmatprep.mubr.bf16.mxu0 0
        %2117 = vmatmul.mubr.bf16.gmra.mrb[0].mxu0 %v1977
        %v2118 = vpop.f32.mrb[0].mxu0
        %v2119 = vadd.f32 %v1874, %v2118
        %v2120 = vpop.f32.mrb[0].mxu0
        %v2121 = vpop.f32.mrb[0].mxu0
        %v2122 = vadd.f32 %v1877, %v2121
        %v2123 = vpop.f32.mrb[0].mxu0
        %2124 = vmatprep.mubr.bf16.mxu0 0
        %2125 = vmatmul.mubr.bf16.gmra.mrb[0].mxu0 %v1980
        %v2126 = vpop.f32.mrb[0].mxu0
        %v2127 = vadd.f32 %v1882, %v2126
        %v2128 = vpop.f32.mrb[0].mxu0
        %v2129 = vpop.f32.mrb[0].mxu0
        %v2130 = vadd.f32 %v1885, %v2129
        %v2131 = vpop.f32.mrb[0].mxu0
        %2132 = vmatprep.mubr.bf16.mxu0 0
        %2133 = vmatmul.mubr.bf16.gmra.mrb[0].mxu0 %v1983
        %v2134 = vpop.f32.mrb[0].mxu0
        %v2135 = vadd.f32 %v1890, %v2134
        %v2136 = vpop.f32.mrb[0].mxu0
        %v2137 = vpop.f32.mrb[0].mxu0
        %v2138 = vadd.f32 %v1893, %v2137
        %v2139 = vpop.f32.mrb[0].mxu0
        %2140 = vmatprep.mubr.bf16.mxu0 0
        %2141 = vmatmul.mubr.bf16.gmra.mrb[0].mxu0 %v1986
        %v2142 = vpop.f32.mrb[0].mxu0
        %v2143 = vadd.f32 %v1898, %v2142
        %v2144 = vpop.f32.mrb[0].mxu0
        %v2145 = vpop.f32.mrb[0].mxu0
        %v2146 = vadd.f32 %v1901, %v2145
        %v2147 = vpop.f32.mrb[0].mxu0
        %2148 = vdwg.mxu0
        %v2149 = vld [vmem:[#allocation2 + $0x27] sm:$0xff]
        %v2150 = vld [vmem:[#allocation2 + $0x2f] sm:$0xff]
        %v2151 = vld [vmem:[#allocation2 + $0x37] sm:$0xff]
        %v2152 = vld [vmem:[#allocation2 + $0x3f] sm:$0xff]
        %v2153 = vld [vmem:[#allocation2 + $0x47] sm:$0xff]
        %v2154 = vld [vmem:[#allocation2 + $0x4f] sm:$0xff]
        %v2155 = vld [vmem:[#allocation2 + $0x57] sm:$0xff]
        %v2156 = vld [vmem:[#allocation2 + $0x5f] sm:$0xff]
        %v2157 = vld [vmem:[#allocation2 + $0x67] sm:$0xff]
        %v2158 = vld [vmem:[#allocation2 + $0x6f] sm:$0xff]
        %v2159 = vld [vmem:[#allocation2 + $0x77] sm:$0xff]
        %v2160 = vld [vmem:[#allocation2 + $0x7f] sm:$0xff]
        %v2161 = vld [vmem:[#allocation2 + $0x87] sm:$0xff]
        %v2162 = vld [vmem:[#allocation2 + $0x8f] sm:$0xff]
        %v2163 = vld [vmem:[#allocation2 + $0x97] sm:$0xff]
        %v2164 = vld [vmem:[#allocation2 + $0x9f] sm:$0xff]
        %v2165 = vld [vmem:[#allocation2 + $0xa7] sm:$0xff]
        %v2166 = vld [vmem:[#allocation2 + $0xaf] sm:$0xff]
        %v2167 = vld [vmem:[#allocation2 + $0xb7] sm:$0xff]
        %v2168 = vld [vmem:[#allocation2 + $0xbf] sm:$0xff]
        %v2169 = vld [vmem:[#allocation2 + $0xc7] sm:$0xff]
        %v2170 = vld [vmem:[#allocation2 + $0xcf] sm:$0xff]
        %v2171 = vld [vmem:[#allocation2 + $0xd7] sm:$0xff]
        %v2172 = vld [vmem:[#allocation2 + $0xdf] sm:$0xff]
        %v2173 = vld [vmem:[#allocation2 + $0xe7] sm:$0xff]
        %v2174 = vld [vmem:[#allocation2 + $0xef] sm:$0xff]
        %v2175 = vld [vmem:[#allocation2 + $0xf7] sm:$0xff]
        %v2176 = vld [vmem:[#allocation2 + $0xff] sm:$0xff]
        %v2177 = vld [vmem:[#allocation2 + $0x107] sm:$0xff]
        %v2178 = vld [vmem:[#allocation2 + $0x10f] sm:$0xff]
        %v2179 = vld [vmem:[#allocation2 + $0x117] sm:$0xff]
        %v2180 = vld [vmem:[#allocation2 + $0x11f] sm:$0xff]
        %v2181 = vld [vmem:[#allocation2 + $0x28] sm:$0xff]
        %v2182 = vld [vmem:[#allocation2 + $0x30] sm:$0xff]
        %v2183 = vld [vmem:[#allocation2 + $0x38] sm:$0xff]
        %v2184 = vld [vmem:[#allocation2 + $0x40] sm:$0xff]
        %v2185 = vld [vmem:[#allocation2 + $0x48] sm:$0xff]
        %v2186 = vld [vmem:[#allocation2 + $0x50] sm:$0xff]
        %v2187 = vld [vmem:[#allocation2 + $0x58] sm:$0xff]
        %v2188 = vld [vmem:[#allocation2 + $0x60] sm:$0xff]
        %v2189 = vld [vmem:[#allocation2 + $0x68] sm:$0xff]
        %v2190 = vld [vmem:[#allocation2 + $0x70] sm:$0xff]
        %v2191 = vld [vmem:[#allocation2 + $0x78] sm:$0xff]
        %v2192 = vld [vmem:[#allocation2 + $0x80] sm:$0xff]
        %v2193 = vld [vmem:[#allocation2 + $0x88] sm:$0xff]
        %v2194 = vld [vmem:[#allocation2 + $0x90] sm:$0xff]
        %v2195 = vld [vmem:[#allocation2 + $0x98] sm:$0xff]
        %v2196 = vld [vmem:[#allocation2 + $0xa0] sm:$0xff]
        %v2197 = vld [vmem:[#allocation2 + $0xa8] sm:$0xff]
        %v2198 = vld [vmem:[#allocation2 + $0xb0] sm:$0xff]
        %v2199 = vld [vmem:[#allocation2 + $0xb8] sm:$0xff]
        %v2200 = vld [vmem:[#allocation2 + $0xc0] sm:$0xff]
        %v2201 = vld [vmem:[#allocation2 + $0xc8] sm:$0xff]
        %v2202 = vld [vmem:[#allocation2 + $0xd0] sm:$0xff]
        %v2203 = vld [vmem:[#allocation2 + $0xd8] sm:$0xff]
        %v2204 = vld [vmem:[#allocation2 + $0xe0] sm:$0xff]
        %v2205 = vld [vmem:[#allocation2 + $0xe8] sm:$0xff]
        %v2206 = vld [vmem:[#allocation2 + $0xf0] sm:$0xff]
        %v2207 = vld [vmem:[#allocation2 + $0xf8] sm:$0xff]
        %v2208 = vld [vmem:[#allocation2 + $0x100] sm:$0xff]
        %v2209 = vld [vmem:[#allocation2 + $0x108] sm:$0xff]
        %v2210 = vld [vmem:[#allocation2 + $0x110] sm:$0xff]
        %v2211 = vld [vmem:[#allocation2 + $0x118] sm:$0xff]
        %v2212 = vld [vmem:[#allocation2 + $0x120] sm:$0xff]
        %v2213 = vld [vmem:[#allocation2 + $0x29] sm:$0xff]
        %v2214 = vld [vmem:[#allocation2 + $0x31] sm:$0xff]
        %v2215 = vld [vmem:[#allocation2 + $0x39] sm:$0xff]
        %v2216 = vld [vmem:[#allocation2 + $0x41] sm:$0xff]
        %v2217 = vld [vmem:[#allocation2 + $0x49] sm:$0xff]
        %v2218 = vld [vmem:[#allocation2 + $0x51] sm:$0xff]
        %v2219 = vld [vmem:[#allocation2 + $0x59] sm:$0xff]
        %v2220 = vld [vmem:[#allocation2 + $0x61] sm:$0xff]
        %v2221 = vld [vmem:[#allocation2 + $0x69] sm:$0xff]
        %v2222 = vld [vmem:[#allocation2 + $0x71] sm:$0xff]
        %v2223 = vld [vmem:[#allocation2 + $0x79] sm:$0xff]
        %v2224 = vld [vmem:[#allocation2 + $0x81] sm:$0xff]
        %v2225 = vld [vmem:[#allocation2 + $0x89] sm:$0xff]
        %v2226 = vld [vmem:[#allocation2 + $0x91] sm:$0xff]
        %v2227 = vld [vmem:[#allocation2 + $0x99] sm:$0xff]
        %v2228 = vld [vmem:[#allocation2 + $0xa1] sm:$0xff]
        %v2229 = vld [vmem:[#allocation2 + $0xa9] sm:$0xff]
        %v2230 = vld [vmem:[#allocation2 + $0xb1] sm:$0xff]
        %v2231 = vld [vmem:[#allocation2 + $0xb9] sm:$0xff]
        %v2232 = vld [vmem:[#allocation2 + $0xc1] sm:$0xff]
        %v2233 = vld [vmem:[#allocation2 + $0xc9] sm:$0xff]
        %v2234 = vld [vmem:[#allocation2 + $0xd1] sm:$0xff]
        %v2235 = vld [vmem:[#allocation2 + $0xd9] sm:$0xff]
        %v2236 = vld [vmem:[#allocation2 + $0xe1] sm:$0xff]
        %v2237 = vld [vmem:[#allocation2 + $0xe9] sm:$0xff]
        %v2238 = vld [vmem:[#allocation2 + $0xf1] sm:$0xff]
        %v2239 = vld [vmem:[#allocation2 + $0xf9] sm:$0xff]
        %v2240 = vld [vmem:[#allocation2 + $0x101] sm:$0xff]
        %v2241 = vld [vmem:[#allocation2 + $0x109] sm:$0xff]
        %v2242 = vld [vmem:[#allocation2 + $0x111] sm:$0xff]
        %v2243 = vld [vmem:[#allocation2 + $0x119] sm:$0xff]
        %v2244 = vld [vmem:[#allocation2 + $0x121] sm:$0xff]
        %v2245 = vsel %vm850, %v2149, 0.0
        %v2246 = vsel %vm851, %v2150, 0.0
        %v2247 = vsel %vm852, %v2151, 0.0
        %v2248 = vsel %vm853, %v2152, 0.0
        %v2249 = vsel %vm854, %v2153, 0.0
        %v2250 = vsel %vm855, %v2154, 0.0
        %v2251 = vsel %vm856, %v2155, 0.0
        %v2252 = vsel %vm857, %v2156, 0.0
        %v2253 = vsel %vm858, %v2157, 0.0
        %v2254 = vsel %vm859, %v2158, 0.0
        %v2255 = vsel %vm860, %v2159, 0.0
        %v2256 = vsel %vm861, %v2160, 0.0
        %v2257 = vsel %vm862, %v2161, 0.0
        %v2258 = vsel %vm863, %v2162, 0.0
        %v2259 = vsel %vm864, %v2163, 0.0
        %v2260 = vsel %vm865, %v2164, 0.0
        %v2261 = vsel %vm866, %v2165, 0.0
        %v2262 = vsel %vm867, %v2166, 0.0
        %v2263 = vsel %vm868, %v2167, 0.0
        %v2264 = vsel %vm869, %v2168, 0.0
        %v2265 = vsel %vm870, %v2169, 0.0
        %v2266 = vsel %vm871, %v2170, 0.0
        %v2267 = vsel %vm872, %v2171, 0.0
        %v2268 = vsel %vm873, %v2172, 0.0
        %v2269 = vsel %vm874, %v2173, 0.0
        %v2270 = vsel %vm875, %v2174, 0.0
        %v2271 = vsel %vm876, %v2175, 0.0
        %v2272 = vsel %vm877, %v2176, 0.0
        %v2273 = vsel %vm878, %v2177, 0.0
        %v2274 = vsel %vm879, %v2178, 0.0
        %v2275 = vsel %vm880, %v2179, 0.0
        %v2276 = vsel %vm881, %v2180, 0.0
        %v2277 = vsel %vm946, %v2213, 0.0
        %v2278 = vsel %vm947, %v2214, 0.0
        %v2279 = vsel %vm948, %v2215, 0.0
        %v2280 = vsel %vm949, %v2216, 0.0
        %v2281 = vsel %vm950, %v2217, 0.0
        %v2282 = vsel %vm951, %v2218, 0.0
        %v2283 = vsel %vm952, %v2219, 0.0
        %v2284 = vsel %vm953, %v2220, 0.0
        %v2285 = vsel %vm954, %v2221, 0.0
        %v2286 = vsel %vm955, %v2222, 0.0
        %v2287 = vsel %vm956, %v2223, 0.0
        %v2288 = vsel %vm957, %v2224, 0.0
        %v2289 = vsel %vm958, %v2225, 0.0
        %v2290 = vsel %vm959, %v2226, 0.0
        %v2291 = vsel %vm960, %v2227, 0.0
        %v2292 = vsel %vm961, %v2228, 0.0
        %v2293 = vsel %vm962, %v2229, 0.0
        %v2294 = vsel %vm963, %v2230, 0.0
        %v2295 = vsel %vm964, %v2231, 0.0
        %v2296 = vsel %vm965, %v2232, 0.0
        %v2297 = vsel %vm966, %v2233, 0.0
        %v2298 = vsel %vm967, %v2234, 0.0
        %v2299 = vsel %vm968, %v2235, 0.0
        %v2300 = vsel %vm969, %v2236, 0.0
        %v2301 = vsel %vm970, %v2237, 0.0
        %v2302 = vsel %vm971, %v2238, 0.0
        %v2303 = vsel %vm972, %v2239, 0.0
        %v2304 = vsel %vm973, %v2240, 0.0
        %v2305 = vsel %vm974, %v2241, 0.0
        %v2306 = vsel %vm975, %v2242, 0.0
        %v2307 = vsel %vm976, %v2243, 0.0
        %v2308 = vsel %vm977, %v2244, 0.0
        %2341 = vrot.lane.b32.xlu0 %v2181, 32
        %v2342 = vpop.permute.xlu0 %2341
        %2343 = vrot.lane.b32.xlu0 %v2182, 32
        %v2344 = vpop.permute.xlu0 %2343
        %2345 = vrot.lane.b32.xlu0 %v2183, 32
        %v2346 = vpop.permute.xlu0 %2345
        %2347 = vrot.lane.b32.xlu0 %v2184, 32
        %v2348 = vpop.permute.xlu0 %2347
        %2349 = vrot.lane.b32.xlu0 %v2185, 32
        %v2350 = vpop.permute.xlu0 %2349
        %2351 = vrot.lane.b32.xlu0 %v2186, 32
        %v2352 = vpop.permute.xlu0 %2351
        %2353 = vrot.lane.b32.xlu0 %v2187, 32
        %v2354 = vpop.permute.xlu0 %2353
        %2355 = vrot.lane.b32.xlu0 %v2188, 32
        %v2356 = vpop.permute.xlu0 %2355
        %2357 = vrot.lane.b32.xlu0 %v2189, 32
        %v2358 = vpop.permute.xlu0 %2357
        %2359 = vrot.lane.b32.xlu0 %v2190, 32
        %v2360 = vpop.permute.xlu0 %2359
        %2361 = vrot.lane.b32.xlu0 %v2191, 32
        %v2362 = vpop.permute.xlu0 %2361
        %2363 = vrot.lane.b32.xlu0 %v2192, 32
        %v2364 = vpop.permute.xlu0 %2363
        %2365 = vrot.lane.b32.xlu0 %v2193, 32
        %v2366 = vpop.permute.xlu0 %2365
        %2367 = vrot.lane.b32.xlu0 %v2194, 32
        %v2368 = vpop.permute.xlu0 %2367
        %2369 = vrot.lane.b32.xlu0 %v2195, 32
        %v2370 = vpop.permute.xlu0 %2369
        %2371 = vrot.lane.b32.xlu0 %v2196, 32
        %v2372 = vpop.permute.xlu0 %2371
        %2373 = vrot.lane.b32.xlu0 %v2197, 32
        %v2374 = vpop.permute.xlu0 %2373
        %2375 = vrot.lane.b32.xlu0 %v2198, 32
        %v2376 = vpop.permute.xlu0 %2375
        %2377 = vrot.lane.b32.xlu0 %v2199, 32
        %v2378 = vpop.permute.xlu0 %2377
        %2379 = vrot.lane.b32.xlu0 %v2200, 32
        %v2380 = vpop.permute.xlu0 %2379
        %2381 = vrot.lane.b32.xlu0 %v2201, 32
        %v2382 = vpop.permute.xlu0 %2381
        %2383 = vrot.lane.b32.xlu0 %v2202, 32
        %v2384 = vpop.permute.xlu0 %2383
        %2385 = vrot.lane.b32.xlu0 %v2203, 32
        %v2386 = vpop.permute.xlu0 %2385
        %2387 = vrot.lane.b32.xlu0 %v2204, 32
        %v2388 = vpop.permute.xlu0 %2387
        %2389 = vrot.lane.b32.xlu0 %v2205, 32
        %v2390 = vpop.permute.xlu0 %2389
        %2391 = vrot.lane.b32.xlu0 %v2206, 32
        %v2392 = vpop.permute.xlu0 %2391
        %2393 = vrot.lane.b32.xlu0 %v2207, 32
        %v2394 = vpop.permute.xlu0 %2393
        %2395 = vrot.lane.b32.xlu0 %v2208, 32
        %v2396 = vpop.permute.xlu0 %2395
        %2397 = vrot.lane.b32.xlu0 %v2209, 32
        %v2398 = vpop.permute.xlu0 %2397
        %2399 = vrot.lane.b32.xlu0 %v2210, 32
        %v2400 = vpop.permute.xlu0 %2399
        %2401 = vrot.lane.b32.xlu0 %v2211, 32
        %v2402 = vpop.permute.xlu0 %2401
        %2403 = vrot.lane.b32.xlu0 %v2212, 32
        %v2404 = vpop.permute.xlu0 %2403
        %2469 = vrot.lane.b32.xlu0 %v2277, 64
        %v2470 = vpop.permute.xlu0 %2469
        %2471 = vrot.lane.b32.xlu0 %v2278, 64
        %v2472 = vpop.permute.xlu0 %2471
        %2473 = vrot.lane.b32.xlu0 %v2279, 64
        %v2474 = vpop.permute.xlu0 %2473
        %2475 = vrot.lane.b32.xlu0 %v2280, 64
        %v2476 = vpop.permute.xlu0 %2475
        %2477 = vrot.lane.b32.xlu0 %v2281, 64
        %v2478 = vpop.permute.xlu0 %2477
        %2479 = vrot.lane.b32.xlu0 %v2282, 64
        %v2480 = vpop.permute.xlu0 %2479
        %2481 = vrot.lane.b32.xlu0 %v2283, 64
        %v2482 = vpop.permute.xlu0 %2481
        %2483 = vrot.lane.b32.xlu0 %v2284, 64
        %v2484 = vpop.permute.xlu0 %2483
        %2485 = vrot.lane.b32.xlu0 %v2285, 64
        %v2486 = vpop.permute.xlu0 %2485
        %2487 = vrot.lane.b32.xlu0 %v2286, 64
        %v2488 = vpop.permute.xlu0 %2487
        %2489 = vrot.lane.b32.xlu0 %v2287, 64
        %v2490 = vpop.permute.xlu0 %2489
        %2491 = vrot.lane.b32.xlu0 %v2288, 64
        %v2492 = vpop.permute.xlu0 %2491
        %2493 = vrot.lane.b32.xlu0 %v2289, 64
        %v2494 = vpop.permute.xlu0 %2493
        %2495 = vrot.lane.b32.xlu0 %v2290, 64
        %v2496 = vpop.permute.xlu0 %2495
        %2497 = vrot.lane.b32.xlu0 %v2291, 64
        %v2498 = vpop.permute.xlu0 %2497
        %2499 = vrot.lane.b32.xlu0 %v2292, 64
        %v2500 = vpop.permute.xlu0 %2499
        %2501 = vrot.lane.b32.xlu0 %v2293, 64
        %v2502 = vpop.permute.xlu0 %2501
        %2503 = vrot.lane.b32.xlu0 %v2294, 64
        %v2504 = vpop.permute.xlu0 %2503
        %2505 = vrot.lane.b32.xlu0 %v2295, 64
        %v2506 = vpop.permute.xlu0 %2505
        %2507 = vrot.lane.b32.xlu0 %v2296, 64
        %v2508 = vpop.permute.xlu0 %2507
        %2509 = vrot.lane.b32.xlu0 %v2297, 64
        %v2510 = vpop.permute.xlu0 %2509
        %2511 = vrot.lane.b32.xlu0 %v2298, 64
        %v2512 = vpop.permute.xlu0 %2511
        %2513 = vrot.lane.b32.xlu0 %v2299, 64
        %v2514 = vpop.permute.xlu0 %2513
        %2515 = vrot.lane.b32.xlu0 %v2300, 64
        %v2516 = vpop.permute.xlu0 %2515
        %2517 = vrot.lane.b32.xlu0 %v2301, 64
        %v2518 = vpop.permute.xlu0 %2517
        %2519 = vrot.lane.b32.xlu0 %v2302, 64
        %v2520 = vpop.permute.xlu0 %2519
        %2521 = vrot.lane.b32.xlu0 %v2303, 64
        %v2522 = vpop.permute.xlu0 %2521
        %2523 = vrot.lane.b32.xlu0 %v2304, 64
        %v2524 = vpop.permute.xlu0 %2523
        %2525 = vrot.lane.b32.xlu0 %v2305, 64
        %v2526 = vpop.permute.xlu0 %2525
        %2527 = vrot.lane.b32.xlu0 %v2306, 64
        %v2528 = vpop.permute.xlu0 %2527
        %2529 = vrot.lane.b32.xlu0 %v2307, 64
        %v2530 = vpop.permute.xlu0 %2529
        %2531 = vrot.lane.b32.xlu0 %v2308, 64
        %v2532 = vpop.permute.xlu0 %2531
        %v2565 = vsel %vm170, %v2245, %v2342
        %v2566 = vsel %vm170, %v2246, %v2344
        %v2567 = vsel %vm170, %v2247, %v2346
        %v2568 = vsel %vm170, %v2248, %v2348
        %v2569 = vsel %vm170, %v2249, %v2350
        %v2570 = vsel %vm170, %v2250, %v2352
        %v2571 = vsel %vm170, %v2251, %v2354
        %v2572 = vsel %vm170, %v2252, %v2356
        %v2573 = vsel %vm170, %v2253, %v2358
        %v2574 = vsel %vm170, %v2254, %v2360
        %v2575 = vsel %vm170, %v2255, %v2362
        %v2576 = vsel %vm170, %v2256, %v2364
        %v2577 = vsel %vm170, %v2257, %v2366
        %v2578 = vsel %vm170, %v2258, %v2368
        %v2579 = vsel %vm170, %v2259, %v2370
        %v2580 = vsel %vm170, %v2260, %v2372
        %v2581 = vsel %vm170, %v2261, %v2374
        %v2582 = vsel %vm170, %v2262, %v2376
        %v2583 = vsel %vm170, %v2263, %v2378
        %v2584 = vsel %vm170, %v2264, %v2380
        %v2585 = vsel %vm170, %v2265, %v2382
        %v2586 = vsel %vm170, %v2266, %v2384
        %v2587 = vsel %vm170, %v2267, %v2386
        %v2588 = vsel %vm170, %v2268, %v2388
        %v2589 = vsel %vm170, %v2269, %v2390
        %v2590 = vsel %vm170, %v2270, %v2392
        %v2591 = vsel %vm170, %v2271, %v2394
        %v2592 = vsel %vm170, %v2272, %v2396
        %v2593 = vsel %vm170, %v2273, %v2398
        %v2594 = vsel %vm170, %v2274, %v2400
        %v2595 = vsel %vm170, %v2275, %v2402
        %v2596 = vsel %vm170, %v2276, %v2404
        %v2597 = vsel %vm1298, %v2565, %v2470
        %v2598 = vsel %vm1298, %v2566, %v2472
        %v2599 = vsel %vm1298, %v2567, %v2474
        %v2600 = vsel %vm1298, %v2568, %v2476
        %v2601 = vsel %vm1298, %v2569, %v2478
        %v2602 = vsel %vm1298, %v2570, %v2480
        %v2603 = vsel %vm1298, %v2571, %v2482
        %v2604 = vsel %vm1298, %v2572, %v2484
        %v2605 = vsel %vm1298, %v2573, %v2486
        %v2606 = vsel %vm1298, %v2574, %v2488
        %v2607 = vsel %vm1298, %v2575, %v2490
        %v2608 = vsel %vm1298, %v2576, %v2492
        %v2609 = vsel %vm1298, %v2577, %v2494
        %v2610 = vsel %vm1298, %v2578, %v2496
        %v2611 = vsel %vm1298, %v2579, %v2498
        %v2612 = vsel %vm1298, %v2580, %v2500
        %v2613 = vsel %vm1298, %v2581, %v2502
        %v2614 = vsel %vm1298, %v2582, %v2504
        %v2615 = vsel %vm1298, %v2583, %v2506
        %v2616 = vsel %vm1298, %v2584, %v2508
        %v2617 = vsel %vm1298, %v2585, %v2510
        %v2618 = vsel %vm1298, %v2586, %v2512
        %v2619 = vsel %vm1298, %v2587, %v2514
        %v2620 = vsel %vm1298, %v2588, %v2516
        %v2621 = vsel %vm1298, %v2589, %v2518
        %v2622 = vsel %vm1298, %v2590, %v2520
        %v2623 = vsel %vm1298, %v2591, %v2522
        %v2624 = vsel %vm1298, %v2592, %v2524
        %v2625 = vsel %vm1298, %v2593, %v2526
        %v2626 = vsel %vm1298, %v2594, %v2528
        %v2627 = vsel %vm1298, %v2595, %v2530
        %v2628 = vsel %vm1298, %v2596, %v2532
        %v2629 = vpack.c.bf16 %v2598, %v2597
        %v2630 = vpack.c.bf16 %v2600, %v2599
        %v2631 = vpack.c.bf16 %v2602, %v2601
        %v2632 = vpack.c.bf16 %v2604, %v2603
        %v2633 = vpack.c.bf16 %v2606, %v2605
        %v2634 = vpack.c.bf16 %v2608, %v2607
        %v2635 = vpack.c.bf16 %v2610, %v2609
        %v2636 = vpack.c.bf16 %v2612, %v2611
        %v2637 = vpack.c.bf16 %v2614, %v2613
        %v2638 = vpack.c.bf16 %v2616, %v2615
        %v2639 = vpack.c.bf16 %v2618, %v2617
        %v2640 = vpack.c.bf16 %v2620, %v2619
        %v2641 = vpack.c.bf16 %v2622, %v2621
        %v2642 = vpack.c.bf16 %v2624, %v2623
        %v2643 = vpack.c.bf16 %v2626, %v2625
        %v2644 = vpack.c.bf16 %v2628, %v2627
        %s2645 = scalar_lea.vmem %s1, 96
        %v2646 = vld [vmem:[%s2645] sm:$0xf]
        %v2647 = vld [vmem:[%s2645 + $0x4] sm:$0xf]
        %v2648 = vld [vmem:[%s2645 + $0x8] sm:$0xf]
        %v2649 = vld [vmem:[%s2645 + $0xc] sm:$0xf]
        %v2650 = vld [vmem:[%s2645 + $0x10] sm:$0xf]
        %v2651 = vld [vmem:[%s2645 + $0x14] sm:$0xf]
        %v2652 = vld [vmem:[%s2645 + $0x18] sm:$0xf]
        %v2653 = vld [vmem:[%s2645 + $0x1c] sm:$0xf]
        %v2654 = vld [vmem:[%s2645 + $0x20] sm:$0xf]
        %v2655 = vld [vmem:[%s2645 + $0x24] sm:$0xf]
        %v2656 = vld [vmem:[%s2645 + $0x28] sm:$0xf]
        %v2657 = vld [vmem:[%s2645 + $0x2c] sm:$0xf]
        %v2670 = vunpack.c.l.b16 %v2646
        %v2671 = vunpack.c.l.b16 %v2647
        %v2672 = vunpack.c.l.b16 %v2648
        %v2673 = vunpack.c.l.b16 %v2649
        %v2674 = vunpack.c.l.b16 %v2650
        %v2675 = vunpack.c.l.b16 %v2651
        %v2676 = vunpack.c.l.b16 %v2652
        %v2677 = vunpack.c.l.b16 %v2653
        %v2678 = vunpack.c.l.b16 %v2654
        %v2679 = vunpack.c.l.b16 %v2655
        %v2680 = vunpack.c.l.b16 %v2656
        %v2681 = vunpack.c.l.b16 %v2657
        %v2682 = vpack.c.b16 %v2671, %v2670
        %v2683 = vpack.c.b16 %v2673, %v2672
        %v2684 = vpack.c.b16 %v2675, %v2674
        %v2685 = vpack.c.b16 %v2677, %v2676
        %v2686 = vpack.c.b16 %v2679, %v2678
        %v2687 = vpack.c.b16 %v2681, %v2680
        %v2695 = vsel %vm1694, %v2629, 0
        %v2698 = vsel %vm1694, %v2630, 0
        %v2701 = vsel %vm1694, %v2631, 0
        %v2704 = vsel %vm1694, %v2632, 0
        %v2707 = vsel %vm1694, %v2633, 0
        %v2710 = vsel %vm1694, %v2634, 0
        %v2713 = vsel %vm1694, %v2635, 0
        %v2716 = vsel %vm1694, %v2636, 0
        %v2719 = vsel %vm1694, %v2637, 0
        %v2722 = vsel %vm1694, %v2638, 0
        %v2725 = vsel %vm1694, %v2639, 0
        %v2728 = vsel %vm1694, %v2640, 0
        %v2731 = vsel %vm1694, %v2641, 0
        %v2734 = vsel %vm1694, %v2642, 0
        %v2737 = vsel %vm1694, %v2643, 0
        %v2740 = vsel %vm1694, %v2644, 0
        %2742 = vmatprep.subr.bf16.mxu0 0
        %2743 = vmatpush1.bf16.msra.mxu0 %v2682
        %2744 = vmatprep.subr.bf16.mxu0 0
        %2745 = vmatpush1.bf16.msra.mxu0 %v2683
        %2746 = vmatprep.subr.bf16.mxu0 0
        %2747 = vmatpush1.bf16.msra.mxu0 %v2684
        %2748 = vmatprep.subr.bf16.mxu0 0
        %2749 = vmatpush1.bf16.msra.mxu0 %v2685
        %2750 = vmatprep.subr.bf16.mxu0 0
        %2751 = vmatpush1.bf16.msra.mxu0 %v2686
        %2752 = vmatprep.subr.bf16.mxu0 0
        %2753 = vmatpush1.bf16.msra.mxu0 %v2687
        %2754 = vmatprep.subr.bf16.mxu0 0
        %2755 = vmatpush1.bf16.msra.mxu0 0
        %2756 = vmatprep.subr.bf16.mxu0 0
        %2757 = vmatpush1.bf16.msra.mxu0 0
        %2758 = vmatprep.subr.bf16.mxu0 0
        %2759 = vmatpush1.bf16.msra.mxu0 0
        %2760 = vmatprep.subr.bf16.mxu0 0
        %2761 = vmatpush1.bf16.msra.mxu0 0
        %2762 = vmatprep.subr.bf16.mxu0 0
        %2763 = vmatpush1.bf16.msra.mxu0 0
        %2764 = vmatprep.subr.bf16.mxu0 0
        %2765 = vmatpush1.bf16.msra.mxu0 0
        %2766 = vmatprep.subr.bf16.mxu0 0
        %2767 = vmatpush1.bf16.msra.mxu0 0
        %2768 = vmatprep.subr.bf16.mxu0 0
        %2769 = vmatpush1.bf16.msra.mxu0 0
        %2770 = vmatprep.subr.bf16.mxu0 0
        %2771 = vmatpush1.bf16.msra.mxu0 0
        %2772 = vmatprep.subr.bf16.mxu0 0
        %2773 = vmatpush1.bf16.msra.mxu0 0
        %2774 = vmatprep.mubr.bf16.mxu0 0
        %2775 = vmatmul.mubr.bf16.gmra.mrb[0].mxu0 %v2695
        %v2776 = vpop.f32.mrb[0].mxu0
        %v2777 = vadd.f32 0.0, %v2776
        %v2778 = vpop.f32.mrb[0].mxu0
        %v2779 = vpop.f32.mrb[0].mxu0
        %v2780 = vadd.f32 0.0, %v2779
        %v2781 = vpop.f32.mrb[0].mxu0
        %2782 = vmatprep.mubr.bf16.mxu0 0
        %2783 = vmatmul.mubr.bf16.gmra.mrb[0].mxu0 %v2698
        %v2784 = vpop.f32.mrb[0].mxu0
        %v2785 = vadd.f32 0.0, %v2784
        %v2786 = vpop.f32.mrb[0].mxu0
        %v2787 = vpop.f32.mrb[0].mxu0
        %v2788 = vadd.f32 0.0, %v2787
        %v2789 = vpop.f32.mrb[0].mxu0
        %2790 = vmatprep.mubr.bf16.mxu0 0
        %2791 = vmatmul.mubr.bf16.gmra.mrb[0].mxu0 %v2701
        %v2792 = vpop.f32.mrb[0].mxu0
        %v2793 = vadd.f32 0.0, %v2792
        %v2794 = vpop.f32.mrb[0].mxu0
        %v2795 = vpop.f32.mrb[0].mxu0
        %v2796 = vadd.f32 0.0, %v2795
        %v2797 = vpop.f32.mrb[0].mxu0
        %2798 = vmatprep.mubr.bf16.mxu0 0
        %2799 = vmatmul.mubr.bf16.gmra.mrb[0].mxu0 %v2704
        %v2800 = vpop.f32.mrb[0].mxu0
        %v2801 = vadd.f32 0.0, %v2800
        %v2802 = vpop.f32.mrb[0].mxu0
        %v2803 = vpop.f32.mrb[0].mxu0
        %v2804 = vadd.f32 0.0, %v2803
        %v2805 = vpop.f32.mrb[0].mxu0
        %2806 = vmatprep.mubr.bf16.mxu0 0
        %2807 = vmatmul.mubr.bf16.gmra.mrb[0].mxu0 %v2707
        %v2808 = vpop.f32.mrb[0].mxu0
        %v2809 = vadd.f32 0.0, %v2808
        %v2810 = vpop.f32.mrb[0].mxu0
        %v2811 = vpop.f32.mrb[0].mxu0
        %v2812 = vadd.f32 0.0, %v2811
        %v2813 = vpop.f32.mrb[0].mxu0
        %2814 = vmatprep.mubr.bf16.mxu0 0
        %2815 = vmatmul.mubr.bf16.gmra.mrb[0].mxu0 %v2710
        %v2816 = vpop.f32.mrb[0].mxu0
        %v2817 = vadd.f32 0.0, %v2816
        %v2818 = vpop.f32.mrb[0].mxu0
        %v2819 = vpop.f32.mrb[0].mxu0
        %v2820 = vadd.f32 0.0, %v2819
        %v2821 = vpop.f32.mrb[0].mxu0
        %2822 = vmatprep.mubr.bf16.mxu0 0
        %2823 = vmatmul.mubr.bf16.gmra.mrb[0].mxu0 %v2713
        %v2824 = vpop.f32.mrb[0].mxu0
        %v2825 = vadd.f32 0.0, %v2824
        %v2826 = vpop.f32.mrb[0].mxu0
        %v2827 = vpop.f32.mrb[0].mxu0
        %v2828 = vadd.f32 0.0, %v2827
        %v2829 = vpop.f32.mrb[0].mxu0
        %2830 = vmatprep.mubr.bf16.mxu0 0
        %2831 = vmatmul.mubr.bf16.gmra.mrb[0].mxu0 %v2716
        %v2832 = vpop.f32.mrb[0].mxu0
        %v2833 = vadd.f32 0.0, %v2832
        %v2834 = vpop.f32.mrb[0].mxu0
        %v2835 = vpop.f32.mrb[0].mxu0
        %v2836 = vadd.f32 0.0, %v2835
        %v2837 = vpop.f32.mrb[0].mxu0
        %2838 = vmatprep.mubr.bf16.mxu0 0
        %2839 = vmatmul.mubr.bf16.gmra.mrb[0].mxu0 %v2719
        %v2840 = vpop.f32.mrb[0].mxu0
        %v2841 = vadd.f32 0.0, %v2840
        %v2842 = vpop.f32.mrb[0].mxu0
        %v2843 = vpop.f32.mrb[0].mxu0
        %v2844 = vadd.f32 0.0, %v2843
        %v2845 = vpop.f32.mrb[0].mxu0
        %2846 = vmatprep.mubr.bf16.mxu0 0
        %2847 = vmatmul.mubr.bf16.gmra.mrb[0].mxu0 %v2722
        %v2848 = vpop.f32.mrb[0].mxu0
        %v2849 = vadd.f32 0.0, %v2848
        %v2850 = vpop.f32.mrb[0].mxu0
        %v2851 = vpop.f32.mrb[0].mxu0
        %v2852 = vadd.f32 0.0, %v2851
        %v2853 = vpop.f32.mrb[0].mxu0
        %2854 = vmatprep.mubr.bf16.mxu0 0
        %2855 = vmatmul.mubr.bf16.gmra.mrb[0].mxu0 %v2725
        %v2856 = vpop.f32.mrb[0].mxu0
        %v2857 = vadd.f32 0.0, %v2856
        %v2858 = vpop.f32.mrb[0].mxu0
        %v2859 = vpop.f32.mrb[0].mxu0
        %v2860 = vadd.f32 0.0, %v2859
        %v2861 = vpop.f32.mrb[0].mxu0
        %2862 = vmatprep.mubr.bf16.mxu0 0
        %2863 = vmatmul.mubr.bf16.gmra.mrb[0].mxu0 %v2728
        %v2864 = vpop.f32.mrb[0].mxu0
        %v2865 = vadd.f32 0.0, %v2864
        %v2866 = vpop.f32.mrb[0].mxu0
        %v2867 = vpop.f32.mrb[0].mxu0
        %v2868 = vadd.f32 0.0, %v2867
        %v2869 = vpop.f32.mrb[0].mxu0
        %2870 = vmatprep.mubr.bf16.mxu0 0
        %2871 = vmatmul.mubr.bf16.gmra.mrb[0].mxu0 %v2731
        %v2872 = vpop.f32.mrb[0].mxu0
        %v2873 = vadd.f32 0.0, %v2872
        %v2874 = vpop.f32.mrb[0].mxu0
        %v2875 = vpop.f32.mrb[0].mxu0
        %v2876 = vadd.f32 0.0, %v2875
        %v2877 = vpop.f32.mrb[0].mxu0
        %2878 = vmatprep.mubr.bf16.mxu0 0
        %2879 = vmatmul.mubr.bf16.gmra.mrb[0].mxu0 %v2734
        %v2880 = vpop.f32.mrb[0].mxu0
        %v2881 = vadd.f32 0.0, %v2880
        %v2882 = vpop.f32.mrb[0].mxu0
        %v2883 = vpop.f32.mrb[0].mxu0
        %v2884 = vadd.f32 0.0, %v2883
        %v2885 = vpop.f32.mrb[0].mxu0
        %2886 = vmatprep.mubr.bf16.mxu0 0
        %2887 = vmatmul.mubr.bf16.gmra.mrb[0].mxu0 %v2737
        %v2888 = vpop.f32.mrb[0].mxu0
        %v2889 = vadd.f32 0.0, %v2888
        %v2890 = vpop.f32.mrb[0].mxu0
        %v2891 = vpop.f32.mrb[0].mxu0
        %v2892 = vadd.f32 0.0, %v2891
        %v2893 = vpop.f32.mrb[0].mxu0
        %2894 = vmatprep.mubr.bf16.mxu0 0
        %2895 = vmatmul.mubr.bf16.gmra.mrb[0].mxu0 %v2740
        %v2896 = vpop.f32.mrb[0].mxu0
        %v2897 = vadd.f32 0.0, %v2896
        %v2898 = vpop.f32.mrb[0].mxu0
        %v2899 = vpop.f32.mrb[0].mxu0
        %v2900 = vadd.f32 0.0, %v2899
        %v2901 = vpop.f32.mrb[0].mxu0
        %2902 = vdwg.mxu0
        %v2903 = vadd.f32 %v2023, %v2777
        %v2904 = vadd.f32 %v2026, %v2780
        %v2905 = vadd.f32 %v2031, %v2785
        %v2906 = vadd.f32 %v2034, %v2788
        %v2907 = vadd.f32 %v2039, %v2793
        %v2908 = vadd.f32 %v2042, %v2796
        %v2909 = vadd.f32 %v2047, %v2801
        %v2910 = vadd.f32 %v2050, %v2804
        %v2911 = vadd.f32 %v2055, %v2809
        %v2912 = vadd.f32 %v2058, %v2812
        %v2913 = vadd.f32 %v2063, %v2817
        %v2914 = vadd.f32 %v2066, %v2820
        %v2915 = vadd.f32 %v2071, %v2825
        %v2916 = vadd.f32 %v2074, %v2828
        %v2917 = vadd.f32 %v2079, %v2833
        %v2918 = vadd.f32 %v2082, %v2836
        %v2919 = vadd.f32 %v2087, %v2841
        %v2920 = vadd.f32 %v2090, %v2844
        %v2921 = vadd.f32 %v2095, %v2849
        %v2922 = vadd.f32 %v2098, %v2852
        %v2923 = vadd.f32 %v2103, %v2857
        %v2924 = vadd.f32 %v2106, %v2860
        %v2925 = vadd.f32 %v2111, %v2865
        %v2926 = vadd.f32 %v2114, %v2868
        %v2927 = vadd.f32 %v2119, %v2873
        %v2928 = vadd.f32 %v2122, %v2876
        %v2929 = vadd.f32 %v2127, %v2881
        %v2930 = vadd.f32 %v2130, %v2884
        %v2931 = vadd.f32 %v2135, %v2889
        %v2932 = vadd.f32 %v2138, %v2892
        %v2933 = vadd.f32 %v2143, %v2897
        %v2934 = vadd.f32 %v2146, %v2900
        %v2935 = vld [vmem:[%s2] sm:$0x1]
        %v2937 = vlaneseq
        %v2938 = vshrl.u32 %v2937, 7
        %v2939 = vsub.s32 0, %v2938
        %v2940 = vrot.slane %v2935, %v2939
        %v2942 = vadd.f32 %v2903, %v2940
        %v2943 = vadd.f32 %v2904, %v2940
        %v2944 = vadd.f32 %v2905, %v2940
        %v2945 = vadd.f32 %v2906, %v2940
        %v2946 = vadd.f32 %v2907, %v2940
        %v2947 = vadd.f32 %v2908, %v2940
        %v2948 = vadd.f32 %v2909, %v2940
        %v2949 = vadd.f32 %v2910, %v2940
        %v2950 = vadd.f32 %v2911, %v2940
        %v2951 = vadd.f32 %v2912, %v2940
        %v2952 = vadd.f32 %v2913, %v2940
        %v2953 = vadd.f32 %v2914, %v2940
        %v2954 = vadd.f32 %v2915, %v2940
        %v2955 = vadd.f32 %v2916, %v2940
        %v2956 = vadd.f32 %v2917, %v2940
        %v2957 = vadd.f32 %v2918, %v2940
        %v2958 = vadd.f32 %v2919, %v2940
        %v2959 = vadd.f32 %v2920, %v2940
        %v2960 = vadd.f32 %v2921, %v2940
        %v2961 = vadd.f32 %v2922, %v2940
        %v2962 = vadd.f32 %v2923, %v2940
        %v2963 = vadd.f32 %v2924, %v2940
        %v2964 = vadd.f32 %v2925, %v2940
        %v2965 = vadd.f32 %v2926, %v2940
        %v2966 = vadd.f32 %v2927, %v2940
        %v2967 = vadd.f32 %v2928, %v2940
        %v2968 = vadd.f32 %v2929, %v2940
        %v2969 = vadd.f32 %v2930, %v2940
        %v2970 = vadd.f32 %v2931, %v2940
        %v2971 = vadd.f32 %v2932, %v2940
        %v2972 = vadd.f32 %v2933, %v2940
        %v2973 = vadd.f32 %v2934, %v2940
        %2974 = vst [vmem:[%s163] sm:$0xff] %v2942
        %2975 = vst [vmem:[%s163 + $0x8] sm:$0xff] %v2943
        %2976 = vst [vmem:[%s163 + $0x10] sm:$0xff] %v2944
        %2977 = vst [vmem:[%s163 + $0x18] sm:$0xff] %v2945
        %2978 = vst [vmem:[%s163 + $0x20] sm:$0xff] %v2946
        %2979 = vst [vmem:[%s163 + $0x28] sm:$0xff] %v2947
        %2980 = vst [vmem:[%s163 + $0x30] sm:$0xff] %v2948
        %2981 = vst [vmem:[%s163 + $0x38] sm:$0xff] %v2949
        %2982 = vst [vmem:[%s163 + $0x40] sm:$0xff] %v2950
        %2983 = vst [vmem:[%s163 + $0x48] sm:$0xff] %v2951
        %2984 = vst [vmem:[%s163 + $0x50] sm:$0xff] %v2952
        %2985 = vst [vmem:[%s163 + $0x58] sm:$0xff] %v2953
        %2986 = vst [vmem:[%s163 + $0x60] sm:$0xff] %v2954
        %2987 = vst [vmem:[%s163 + $0x68] sm:$0xff] %v2955
        %2988 = vst [vmem:[%s163 + $0x70] sm:$0xff] %v2956
        %2989 = vst [vmem:[%s163 + $0x78] sm:$0xff] %v2957
        %2990 = vst [vmem:[%s163 + $0x80] sm:$0xff] %v2958
        %2991 = vst [vmem:[%s163 + $0x88] sm:$0xff] %v2959
        %2992 = vst [vmem:[%s163 + $0x90] sm:$0xff] %v2960
        %2993 = vst [vmem:[%s163 + $0x98] sm:$0xff] %v2961
        %2994 = vst [vmem:[%s163 + $0xa0] sm:$0xff] %v2962
        %2995 = vst [vmem:[%s163 + $0xa8] sm:$0xff] %v2963
        %2996 = vst [vmem:[%s163 + $0xb0] sm:$0xff] %v2964
        %2997 = vst [vmem:[%s163 + $0xb8] sm:$0xff] %v2965
        %2998 = vst [vmem:[%s163 + $0xc0] sm:$0xff] %v2966
        %2999 = vst [vmem:[%s163 + $0xc8] sm:$0xff] %v2967
        %3000 = vst [vmem:[%s163 + $0xd0] sm:$0xff] %v2968
        %3001 = vst [vmem:[%s163 + $0xd8] sm:$0xff] %v2969
        %3002 = vst [vmem:[%s163 + $0xe0] sm:$0xff] %v2970
        %3003 = vst [vmem:[%s163 + $0xe8] sm:$0xff] %v2971
        %3004 = vst [vmem:[%s163 + $0xf0] sm:$0xff] %v2972
        %3005 = vst [vmem:[%s163 + $0xf8] sm:$0xff] %v2973
        %s3006 = sand.u32 %s93, 1
        %s3007 = scalar_lea.sflag [#allocation4], %s3006
        %s3008 = sand.u32 %s93, 1
        %s3009 = smul.addr %s3008, 256
        %s3010 = scalar_lea.vmem [#allocation3], %s3009
        // Predicated region
        $region33: #{tpu_custom_call.1} parent=31 // pred_check
          %p3011 = pneg %p103
        $region34: #{tpu_custom_call.1} parent=31 // pred_check_branch
          %3013 = sbr.rel (%p3011) target = $region36
        $region35: #{tpu_custom_call.1} parent=31 // pred_region
          %s3015 = ssub.s32 4096, 4096
          %3016 = vsyncadd %s3007, %s3015
          %s3017 = smul.addr %s17, 32
          %s3018 = smul.addr %s3017, 128
          %s3019 = scalar_lea.hbm %s3, %s3018
          %s3020 = sshll.u32 %s3010, 4
          %s3021 = int_to_ptr.vmem [resolvable:$true] %s3020
          %3026 = dma.vmem_to_hbm [thread:$0]  %s3021, 4096, %s3019, %s3007, 128, 128, 8
        $region36: #{tpu_custom_call.1} parent=31 // pred_fallthru
          _
      $region32: #{tpu_custom_call.1} parent=5 // pred_fallthru
        _
      %p3027 = scmp.le.s32.totalorder 2, %s12
      // Predicated region
      $region37: #{tpu_custom_call.1} parent=5 // pred_check
        %p3028 = pneg %p3027
      $region38: #{tpu_custom_call.1} parent=5 // pred_check_branch
        %3030 = sbr.rel (%p3028) target = $region40
      $region39: #{tpu_custom_call.1} parent=5 // pred_region
        %s3031 = ssub.s32 %s12, 2
        // Predicated region
        $region41: #{tpu_custom_call.1} parent=39 // pred_check
          %p3032 = pneg %p109
        $region42: #{tpu_custom_call.1} parent=39 // pred_check_branch
          %3034 = sbr.rel (%p3032) target = $region44
        $region43: #{tpu_custom_call.1} parent=39 // pred_region
          %s3035 = sand.u32 %s94, 1
          %s3036 = scalar_lea.sflag [#allocation4], %s3035
          %s3037 = sand.u32 %s94, 1
          %s3038 = smul.addr %s3037, 256
          %s3039 = scalar_lea.vmem [#allocation3], %s3038
          %3040 = dma.done %s3036, 4096
        $region44: #{tpu_custom_call.1} parent=39 // pred_fallthru
          _
      $region40: #{tpu_custom_call.1} parent=5 // pred_fallthru
        _
    $region6: #{tpu_custom_call.1} parent=1 // loop_footer
      %s16 = sadd.s32 1, %s12
    $region7: #{tpu_custom_call.1} parent=1 // loop_footer_branch
      %11 = sbr.rel target = $region3
    $region8: #{tpu_custom_call.1} parent=1 // loop_exit
      _
    %3041 = vsyncpa [#allocation4], 1
    %s3042 = scalar_lea.sflag [#allocation4], 1
    %3043 = vsyncpa %s3042, 1

</llo_original>
